<compile_context>
chip_gen: v6e
topology: v6e:2x2x1
jax: 0.10.0
libtpu: 0.0.40
codegen_flags: <defaults>
</compile_context>

<pallas_src>
import functools

import jax
import jax.numpy as jnp
from jax.experimental import pallas as pl
from jax.experimental.pallas import tpu as pltpu


# Rows of the packed parameter-vector slab (each row padded to the slab width).
(_B1A, _B2, _B3, _G1, _BE1, _BIN, _BOUT, _G2, _BE2,
 _B11, _B12, _B13, _G3, _BE3, _NUM_VEC_ROWS) = range(15)


def _round_up(x, m):
    return ((x + m - 1) // m) * m


def _gelu(x, approx):
    # torch.nn.GELU() default is the exact erf form; approximate=True (tanh) runs on
    # the EUP.  Default is the tanh approximation -- pass approx_gelu=False to the
    # wrapper for bit-closer parity with torch (exact erf).
    return jax.nn.gelu(x, approximate=approx)


def _layernorm(x, gamma, beta, eps=1e-5):
    mu = jnp.mean(x, axis=-1, keepdims=True)
    var = jnp.mean((x - mu) ** 2, axis=-1, keepdims=True)
    return (x - mu) * jax.lax.rsqrt(var + eps) * gamma + beta


# --------------------------------- kernel ------------------------------------

def gnn_e3_kernel(
    # streamed edge-tile inputs
    src_col_ref, dst_col_ref, src_row_ref,
    # resident node features / streamed edge features
    hV_ref, hE_ref,
    # resident weights (bf16)
    W1A_ref, W2_ref, W3_ref, Win_ref, Wout_ref, W11_ref, W12_ref, W13_ref,
    # packed bias / gain slab (f32)
    vec_ref,
    # outputs
    hV_out_ref, hE_out_ref,
    # persistent scratch
    acc_ref, hV2_ref, sume_ref,
    *, scale, H, Ce, E_real, approx_gelu,
):
    f32, bf16 = jnp.float32, jnp.bfloat16
    N_pad = hV_ref.shape[0]
    TE = src_col_ref.shape[0]

    phase = pl.program_id(0)
    t = pl.program_id(1)
    n_tiles = pl.num_programs(1)

    def vrow(i, w):                                 # (1, w) f32 slice of the slab
        return vec_ref[i:i + 1, :w]

    src_col = src_col_ref[...]                      # (TE, 1) int32
    dst_col = dst_col_ref[...]                      # (TE, 1) int32
    src_row = src_row_ref[...]                      # (1, TE) int32
    hE32 = hE_ref[...]                              # (TE, Ce) f32
    hE_bf = hE32.astype(bf16)                       # cast once, reused both phases

    # Per-tile one-hot gather matrices (TE, N_pad), built once, used in both phases.
    col = jax.lax.broadcasted_iota(jnp.int32, (TE, N_pad), 1)
    S = (col == src_col).astype(bf16)
    D = (col == dst_col).astype(bf16)

    def edge_mlp(node_feat_bf, Wa_ref, ba, Wb_ref, bb, Wc_ref, bc, *, logit_col):
        hs = jnp.dot(S, node_feat_bf, preferred_element_type=f32).astype(bf16)
        hd = jnp.dot(D, node_feat_bf, preferred_element_type=f32).astype(bf16)
        h_EV = jnp.concatenate([hs, hE_bf, hd], axis=-1)          # (TE, 2H+Ce) bf16
        z = jnp.dot(h_EV, Wa_ref[...], preferred_element_type=f32) + ba
        h = _gelu(z[:, :H], approx_gelu)
        h = _gelu(jnp.dot(h.astype(bf16), Wb_ref[...],
                          preferred_element_type=f32) + bb, approx_gelu)
        msg = jnp.dot(h.astype(bf16), Wc_ref[...], preferred_element_type=f32) + bc
        if logit_col:
            return msg, z[:, H:H + 1]               # extra fused column == h_EV @ A
        return msg, None

    # ------------------------- phase 0: message passing -------------------------
    @pl.when(phase == 0)
    def _phase0():
        @pl.when(t == 0)
        def _init():
            acc_ref[...] = jnp.zeros_like(acc_ref)
            sume_ref[...] = jnp.zeros_like(sume_ref)

        msg, logit = edge_mlp(
            hV_ref[...].astype(bf16),
            W1A_ref, vrow(_B1A, H + 1),
            W2_ref, vrow(_B2, H),
            W3_ref, vrow(_B3, H),
            logit_col=True)

        # attention weights; global normalization deferred until after the scatter
        lrelu = jnp.where(logit >= 0, logit, 0.01 * logit)
        e = jnp.exp(jax.nn.sigmoid(lrelu))                         # (TE, 1), in (1, e)
        # mask the padded edges of the last tile
        eid = t * TE + jax.lax.broadcasted_iota(jnp.int32, (TE, 1), 0)
        e = jnp.where(eid < E_real, e, 0.0)
        sume_ref[...] += jnp.sum(e, keepdims=True)

        msg_w = (msg * e).astype(bf16)                             # padded rows -> 0

        # scatter-add by src for this tile via an (N_pad, TE) one-hot on the MXU
        row = jax.lax.broadcasted_iota(jnp.int32, (N_pad, TE), 0)
        P = (row == src_row).astype(bf16)
        acc_ref[...] += jnp.dot(P, msg_w, preferred_element_type=f32)

        # node update once every edge tile has been accumulated
        @pl.when(t == n_tiles - 1)
        def _node_update():
            dh = acc_ref[...] / (sume_ref[...] * scale)
            hV1 = _layernorm(hV_ref[...] + dh, vrow(_G1, H), vrow(_BE1, H))
            ff = jnp.maximum(
                jnp.dot(hV1.astype(bf16), Win_ref[...], preferred_element_type=f32)
                + vrow(_BIN, 4 * H), 0.0)
            dh2 = (jnp.dot(ff.astype(bf16), Wout_ref[...], preferred_element_type=f32)
                   + vrow(_BOUT, H))
            hV2 = _layernorm(hV1 + dh2, vrow(_G2, H), vrow(_BE2, H))
            hV2_ref[...] = hV2
            hV_out_ref[...] = hV2.astype(hV_out_ref.dtype)

    # ------------------------- phase 1: edge update ------------------------------
    @pl.when(phase == 1)
    def _phase1():
        msg2, _ = edge_mlp(
            hV2_ref[...].astype(bf16),
            W11_ref, vrow(_B11, H),
            W12_ref, vrow(_B12, H),
            W13_ref, vrow(_B13, H),
            logit_col=False)
        hE_out_ref[...] = _layernorm(hE32 + msg2, vrow(_G3, Ce),
                                     vrow(_BE3, Ce)).astype(hE_out_ref.dtype)


# ------------------------------ python wrapper --------------------------------

def gnn_module_e3(h_V, h_E, edge_idx, batch_id, params, *,
                  scale=30.0, approx_gelu=True, edge_tile=None):
    """Pallas implementation of GNNModule_E3.forward (eval mode)."""
    del batch_id                       # unused in the reference forward
    N, H = h_V.shape
    E, Ce = h_E.shape
    p = params
    f32, bf16 = jnp.float32, jnp.bfloat16

    # ---- hardware-aware sizing (smaller tiles / limit on 64 MiB v7x) ----------
    try:
        vmem_cap = int(pltpu.get_tpu_info().vmem_capacity_bytes)
    except Exception:                  # heuristic only; does not hide kernel errors
        vmem_cap = 64 * 1024 * 1024
    vmem_limit = max(32 * 1024 * 1024,
                     min(int(0.55 * vmem_cap), 100 * 1024 * 1024))
    te_max = 256 if vmem_cap <= 80 * 1024 * 1024 else 512
    if edge_tile is not None:
        te_max = _round_up(int(edge_tile), 128)

    N_pad = _round_up(N, 8)
    if E <= te_max:                    # single tile: only needs 8-row alignment
        TE = _round_up(E, 8)
        E_pad = TE
    else:                              # multiple tiles: lane-aligned tile width
        TE = te_max
        E_pad = _round_up(E, TE)
    n_tiles = E_pad // TE

    # ---- pad inputs (dummy edges are masked in-kernel via E_real) --------------
    hV_p = jnp.pad(h_V.astype(f32), ((0, N_pad - N), (0, 0)))
    hE_p = jnp.pad(h_E.astype(f32), ((0, E_pad - E), (0, 0)))
    src = jnp.pad(edge_idx[0].astype(jnp.int32), (0, E_pad - E))
    dst = jnp.pad(edge_idx[1].astype(jnp.int32), (0, E_pad - E))
    src_col = src.reshape(E_pad, 1)
    dst_col = dst.reshape(E_pad, 1)
    src_row = src.reshape(1, E_pad)

    # Fuse W1 with the attention vector A as one extra output column (logit column).
    W1A = jnp.concatenate([p["W1"], p["A"].reshape(-1, 1)], axis=1).astype(bf16)

    # Pack every small bias / gain vector into one f32 slab: one DMA instead of ~20.
    width = _round_up(max(H + 1, Ce, 4 * H, 128), 128)

    def padded(v):
        v = jnp.asarray(v, f32).reshape(-1)
        return jnp.pad(v, (0, width - v.shape[0]))

    b1A = jnp.concatenate([jnp.asarray(p["b1"], f32), jnp.zeros((1,), f32)])
    rows = [None] * _NUM_VEC_ROWS
    rows[_B1A], rows[_B2], rows[_B3] = b1A, p["b2"], p["b3"]
    rows[_G1], rows[_BE1] = p["g1"], p["beta1"]
    rows[_BIN], rows[_BOUT] = p["bin"], p["bout"]
    rows[_G2], rows[_BE2] = p["g2"], p["beta2"]
    rows[_B11], rows[_B12], rows[_B13] = p["b11"], p["b12"], p["b13"]
    rows[_G3], rows[_BE3] = p["g3"], p["beta3"]
    vec = jnp.stack([padded(v) for v in rows], axis=0)

    # ---- specs ------------------------------------------------------------------
    def resident(shape):               # full-array block, fetched once
        return pl.BlockSpec(shape, lambda p_, t_: (0,) * len(shape))

    edge_col_spec = pl.BlockSpec((TE, 1), lambda p_, t_: (t_, 0))
    edge_row_spec = pl.BlockSpec((1, TE), lambda p_, t_: (0, t_))
    edge_feat_spec = pl.BlockSpec((TE, Ce), lambda p_, t_: (t_, 0))

    in_specs = [
        edge_col_spec, edge_col_spec, edge_row_spec,
        resident((N_pad, H)), edge_feat_spec,
        resident(tuple(W1A.shape)), resident((H, H)), resident((H, H)),
        resident((H, 4 * H)), resident((4 * H, H)),
        resident((2 * H + Ce, H)), resident((H, H)), resident((H, H)),
        resident((_NUM_VEC_ROWS, width)),
    ]
    out_specs = (
        pl.BlockSpec((N_pad, H), lambda p_, t_: (0, 0)),
        # phase 0 never touches h_E_out: keep its block index parked at 0 (p_*t_)
        # so no uninitialized tile is ever written back to HBM.
        pl.BlockSpec((TE, Ce), lambda p_, t_: (p_ * t_, 0)),
    )
    scratch_shapes = [
        pltpu.VMEM((N_pad, H), f32),    # dh accumulator
        pltpu.VMEM((N_pad, H), f32),    # updated node features for phase 1
        pltpu.VMEM((1, 1), f32),        # running sum of attention weights
    ]

    # ---- scheduler hint -----------------------------------------------------------
    mm = lambda m, k, n: 2 * m * k * n
    flops = (4 * mm(E_pad, N_pad, H)                                 # gathers (2 ph.)
             + mm(N_pad, E_pad, H)                                   # scatter
             + 2 * (mm(E_pad, 2 * H + Ce, H + 1) + 2 * mm(E_pad, H, H))  # edge MLPs
             + mm(N_pad, H, 4 * H) + mm(N_pad, 4 * H, H))            # node FFN
    bytes_accessed = (4 * (2 * N_pad * H + 3 * E_pad * Ce + 3 * E_pad)
                      + 2 * (2 * (2 * H + Ce) * H + 8 * H * H + 2 * H)
                      + 4 * _NUM_VEC_ROWS * width)
    cost = pl.CostEstimate(flops=int(flops),
                           transcendentals=int(4 * E_pad * H + 2 * E_pad),
                           bytes_accessed=int(bytes_accessed))

    kernel = functools.partial(
        gnn_e3_kernel, scale=float(scale), H=H, Ce=Ce, E_real=E,
        approx_gelu=approx_gelu)

    hV_out, hE_out = pl.pallas_call(
        kernel,
        out_shape=(jax.ShapeDtypeStruct((N_pad, H), f32),
                   jax.ShapeDtypeStruct((E_pad, Ce), f32)),
        grid_spec=pltpu.PrefetchScalarGridSpec(
            num_scalar_prefetch=0,
            grid=(2, n_tiles),                       # (phase, edge tile)
            in_specs=in_specs,
            out_specs=out_specs,
            scratch_shapes=scratch_shapes),
        compiler_params=pltpu.CompilerParams(
            dimension_semantics=("arbitrary", "arbitrary"),
            vmem_limit_bytes=vmem_limit),
        cost_estimate=cost,
    )(src_col, dst_col, src_row, hV_p, hE_p,
      W1A, p["W2"].astype(bf16), p["W3"].astype(bf16),
      p["Win"].astype(bf16), p["Wout"].astype(bf16),
      p["W11"].astype(bf16), p["W12"].astype(bf16), p["W13"].astype(bf16),
      vec)

    return hV_out[:N], hE_out[:E]


# ------------------------------ pure-JAX reference -----------------------------

def gnn_module_e3_ref(h_V, h_E, edge_idx, batch_id, params, *, scale=30.0):
    del batch_id
    N, H = h_V.shape
    src, dst = edge_idx[0], edge_idx[1]
    p = params
    gelu = lambda x: jax.nn.gelu(x, approximate=False)
    ln = lambda x, g, b: ((x - x.mean(-1, keepdims=True))
                          / jnp.sqrt(x.var(-1, keepdims=True) + 1e-5) * g + b)

    h_EV = jnp.concatenate([h_V[src], h_E, h_V[dst]], axis=-1)
    h_msg = gelu(h_EV @ p["W1"] + p["b1"])
    h_msg = gelu(h_msg @ p["W2"] + p["b2"])
    h_msg = h_msg @ p["W3"] + p["b3"]
    logit = (h_EV @ p["A"].reshape(-1, 1)).squeeze(-1)
    e = jnp.exp(jax.nn.sigmoid(jnp.where(logit >= 0, logit, 0.01 * logit)))
    e = e / e.sum(-1)
    h_msg = h_msg * e[:, None]
    dh = jnp.zeros((N, H), jnp.float32).at[src].add(h_msg) / scale
    h_V = ln(h_V + dh, p["g1"], p["beta1"])
    dh = jnp.maximum(h_V @ p["Win"] + p["bin"], 0.0) @ p["Wout"] + p["bout"]
    h_V = ln(h_V + dh, p["g2"], p["beta2"])
    h_EV = jnp.concatenate([h_V[src], h_E, h_V[dst]], axis=-1)
    h_msg = gelu(h_EV @ p["W11"] + p["b11"])
    h_msg = gelu(h_msg @ p["W12"] + p["b12"])
    h_msg = h_msg @ p["W13"] + p["b13"]
    h_E = ln(h_E + h_msg, p["g3"], p["beta3"])
    return h_V, h_E


# ----------------------------------- main --------------------------------------

if __name__ == "__main__":
    # small shapes: num_hidden = 32, edge feature dim = 32  =>  num_in = 64
    H, Ce = 32, 32
    num_in = Ce + H
    N, E = 8, 32

    key = jax.random.PRNGKey(0)
    ks = jax.random.split(key, 32)
    ki = iter(ks)
    nrm = lambda shape, s=0.1: (s * jax.random.normal(next(ki), shape)).astype(jnp.float32)

    params = dict(
        W1=nrm((H + num_in, H)), b1=nrm((H,)),
        W2=nrm((H, H)), b2=nrm((H,)),
        W3=nrm((H, H)), b3=nrm((H,)),
        W11=nrm((H + num_in, H)), b11=nrm((H,)),
        W12=nrm((H, H)), b12=nrm((H,)),
        W13=nrm((H, H)), b13=nrm((H,)),
        A=nrm((H + num_in,)),
        g1=jnp.ones((H,), jnp.float32), beta1=jnp.zeros((H,), jnp.float32),
        g2=jnp.ones((H,), jnp.float32), beta2=jnp.zeros((H,), jnp.float32),
        g3=jnp.ones((Ce,), jnp.float32), beta3=jnp.zeros((Ce,), jnp.float32),
        Win=nrm((H, 4 * H)), bin=nrm((4 * H,)),
        Wout=nrm((4 * H, H)), bout=nrm((H,)),
    )

    h_V = nrm((N, H), 1.0)
    h_E = nrm((E, Ce), 1.0)
    src = jax.random.randint(next(ki), (E,), 0, N, dtype=jnp.int32)
    dst = jax.random.randint(next(ki), (E,), 0, N, dtype=jnp.int32)
    edge_idx = jnp.stack([src, dst], axis=0)
    batch_id = jnp.zeros((N,), jnp.int32)

    hV_out, hE_out = gnn_module_e3(h_V, h_E, edge_idx, batch_id, params, scale=30.0)
    jax.block_until_ready((hV_out, hE_out))

    hV_ref, hE_ref = gnn_module_e3_ref(h_V, h_E, edge_idx, batch_id, params, scale=30.0)

    # Tolerance accounts for bf16 MXU inputs (f32 accumulate) + tanh-approx GELU vs
    # the exact-erf f32 reference; observed errors are well below this bound.
    for name, got, want in (("h_V", hV_out, hV_ref), ("h_E", hE_out, hE_ref)):
        err = float(jnp.max(jnp.abs(got - want)))
        assert err < 5e-2, f"{name} mismatch: max abs err {err}"

    print("KERNEL_OK")
</pallas_src>

<mosaic_0001>
module attributes {stable_mosaic.version = 11 : i64} {
  func.func @gnn_e3_kernel(%arg0: i32, %arg1: i32, %arg2: memref<32x1xi32, #tpu.memory_space<vmem>>, %arg3: memref<32x1xi32, #tpu.memory_space<vmem>>, %arg4: memref<1x32xi32, #tpu.memory_space<vmem>>, %arg5: memref<8x32xf32, #tpu.memory_space<vmem>>, %arg6: memref<32x32xf32, #tpu.memory_space<vmem>>, %arg7: memref<96x33xbf16, #tpu.memory_space<vmem>>, %arg8: memref<32x32xbf16, #tpu.memory_space<vmem>>, %arg9: memref<32x32xbf16, #tpu.memory_space<vmem>>, %arg10: memref<32x128xbf16, #tpu.memory_space<vmem>>, %arg11: memref<128x32xbf16, #tpu.memory_space<vmem>>, %arg12: memref<96x32xbf16, #tpu.memory_space<vmem>>, %arg13: memref<32x32xbf16, #tpu.memory_space<vmem>>, %arg14: memref<32x32xbf16, #tpu.memory_space<vmem>>, %arg15: memref<14x128xf32, #tpu.memory_space<vmem>>, %arg16: memref<8x32xf32, #tpu.memory_space<vmem>>, %arg17: memref<32x32xf32, #tpu.memory_space<vmem>>, %arg18: memref<8x32xf32, #tpu.memory_space<vmem>>, %arg19: memref<8x32xf32, #tpu.memory_space<vmem>>, %arg20: memref<1x1xf32, #tpu.memory_space<vmem>>) attributes {dimension_semantics = [#tpu.dimension_semantics<arbitrary>, #tpu.dimension_semantics<arbitrary>], iteration_bounds = array<i64: 2, 1>, scalar_prefetch = 0 : i64, scratch_operands = 3 : i64, tpu.core_type = #tpu.core_type<tc>, window_params = [{transform_indices = @transform_0, window_bounds = array<i64: 32, 1>}, {transform_indices = @transform_1, window_bounds = array<i64: 32, 1>}, {transform_indices = @transform_2, window_bounds = array<i64: 1, 32>}, {pipeline_mode = #tpu.pipeline_mode<synchronous>, transform_indices = @transform_3, window_bounds = array<i64: 8, 32>}, {transform_indices = @transform_4, window_bounds = array<i64: 32, 32>}, {pipeline_mode = #tpu.pipeline_mode<synchronous>, transform_indices = @transform_5, window_bounds = array<i64: 96, 33>}, {pipeline_mode = #tpu.pipeline_mode<synchronous>, transform_indices = @transform_6, window_bounds = array<i64: 32, 32>}, {pipeline_mode = #tpu.pipeline_mode<synchronous>, transform_indices = @transform_7, window_bounds = array<i64: 32, 32>}, {pipeline_mode = #tpu.pipeline_mode<synchronous>, transform_indices = @transform_8, window_bounds = array<i64: 32, 128>}, {pipeline_mode = #tpu.pipeline_mode<synchronous>, transform_indices = @transform_9, window_bounds = array<i64: 128, 32>}, {pipeline_mode = #tpu.pipeline_mode<synchronous>, transform_indices = @transform_10, window_bounds = array<i64: 96, 32>}, {pipeline_mode = #tpu.pipeline_mode<synchronous>, transform_indices = @transform_11, window_bounds = array<i64: 32, 32>}, {pipeline_mode = #tpu.pipeline_mode<synchronous>, transform_indices = @transform_12, window_bounds = array<i64: 32, 32>}, {pipeline_mode = #tpu.pipeline_mode<synchronous>, transform_indices = @transform_13, window_bounds = array<i64: 14, 128>}, {pipeline_mode = #tpu.pipeline_mode<synchronous>, transform_indices = @transform_14, window_bounds = array<i64: 8, 32>}, {transform_indices = @transform_15, window_bounds = array<i64: 32, 32>}]} {
    %c0 = arith.constant 0 : index
    %c0_0 = arith.constant 0 : index
    %0 = vector.load %arg2[%c0, %c0_0] : memref<32x1xi32, #tpu.memory_space<vmem>>, vector<32x1xi32>
    %c0_1 = arith.constant 0 : index
    %c0_2 = arith.constant 0 : index
    %1 = vector.load %arg3[%c0_1, %c0_2] : memref<32x1xi32, #tpu.memory_space<vmem>>, vector<32x1xi32>
    %c0_3 = arith.constant 0 : index
    %c0_4 = arith.constant 0 : index
    %2 = vector.load %arg4[%c0_3, %c0_4] : memref<1x32xi32, #tpu.memory_space<vmem>>, vector<1x32xi32>
    %c0_5 = arith.constant 0 : index
    %c0_6 = arith.constant 0 : index
    %3 = vector.load %arg6[%c0_5, %c0_6] : memref<32x32xf32, #tpu.memory_space<vmem>>, vector<32x32xf32>
    %4 = arith.truncf %3 : vector<32x32xf32> to vector<32x32xbf16>
    %5 = tpu.iota {dimensions = array<i32: 1>} : vector<32x8xi32>
    %6 = vector.broadcast %0 : vector<32x1xi32> to vector<32x8xi32>
    %7 = arith.cmpi eq, %5, %6 : vector<32x8xi32>
    %8 = arith.extui %7 : vector<32x8xi1> to vector<32x8xi32>
    %9 = arith.sitofp %8 : vector<32x8xi32> to vector<32x8xf32>
    %10 = arith.truncf %9 : vector<32x8xf32> to vector<32x8xbf16>
    %11 = vector.broadcast %1 : vector<32x1xi32> to vector<32x8xi32>
    %12 = arith.cmpi eq, %5, %11 : vector<32x8xi32>
    %13 = arith.extui %12 : vector<32x8xi1> to vector<32x8xi32>
    %14 = arith.sitofp %13 : vector<32x8xi32> to vector<32x8xf32>
    %15 = arith.truncf %14 : vector<32x8xf32> to vector<32x8xbf16>
    %c0_i32 = arith.constant 0 : i32
    %16 = arith.cmpi eq, %arg0, %c0_i32 : i32
    %17 = arith.extui %16 : i1 to i32
    %c0_i32_7 = arith.constant 0 : i32
    %18 = arith.cmpi ne, %17, %c0_i32_7 : i32
    scf.if %18 {
      %c0_i32_9 = arith.constant 0 : i32
      %22 = arith.cmpi eq, %arg1, %c0_i32_9 : i32
      %23 = arith.extui %22 : i1 to i32
      %c0_i32_10 = arith.constant 0 : i32
      %24 = arith.cmpi ne, %23, %c0_i32_10 : i32
      scf.if %24 {
        %cst_52 = arith.constant 0.000000e+00 : f32
        %120 = vector.broadcast %cst_52 : f32 to vector<8x32xf32>
        %c0_53 = arith.constant 0 : index
        %c0_54 = arith.constant 0 : index
        %121 = vector.load %arg18[%c0_53, %c0_54] : memref<8x32xf32, #tpu.memory_space<vmem>>, vector<8x32xf32>
        tpu.vector_store %arg18[%c0_53, %c0_54], %120 {strides = array<i32>} : memref<8x32xf32, #tpu.memory_space<vmem>>, vector<8x32xf32>,
        %cst_55 = arith.constant 0.000000e+00 : f32
        %122 = vector.broadcast %cst_55 : f32 to vector<1x1xf32>
        %c0_56 = arith.constant 0 : index
        %c0_57 = arith.constant 0 : index
        %123 = vector.load %arg20[%c0_56, %c0_57] : memref<1x1xf32, #tpu.memory_space<vmem>>, vector<1x1xf32>
        tpu.vector_store %arg20[%c0_56, %c0_57], %122 {strides = array<i32>} : memref<1x1xf32, #tpu.memory_space<vmem>>, vector<1x1xf32>,
      } else {
      }
      %c0_11 = arith.constant 0 : index
      %c0_12 = arith.constant 0 : index
      %25 = vector.load %arg5[%c0_11, %c0_12] : memref<8x32xf32, #tpu.memory_space<vmem>>, vector<8x32xf32>
      %26 = arith.truncf %25 : vector<8x32xf32> to vector<8x32xbf16>
      %c0_13 = arith.constant 0 : index
      %c0_14 = arith.constant 0 : index
      %27 = vector.load %arg15[%c0_13, %c0_14] : memref<14x128xf32, #tpu.memory_space<vmem>>, vector<1x33xf32>
      %c1 = arith.constant 1 : index
      %c0_15 = arith.constant 0 : index
      %28 = vector.load %arg15[%c1, %c0_15] : memref<14x128xf32, #tpu.memory_space<vmem>>, vector<1x32xf32>
      %c2 = arith.constant 2 : index
      %c0_16 = arith.constant 0 : index
      %29 = vector.load %arg15[%c2, %c0_16] : memref<14x128xf32, #tpu.memory_space<vmem>>, vector<1x32xf32>
      %cst = arith.constant dense<0.000000e+00> : vector<32x32xf32>
      %30 = tpu.matmul %10, %26, %cst {dimension_numbers = #tpu.dot_dimension_numbers<[1], [0], [0], [1], [0, 0, 1, 1], [], []>} : vector<32x8xbf16>, vector<8x32xbf16>, vector<32x32xf32> -> vector<32x32xf32>
      %31 = arith.truncf %30 : vector<32x32xf32> to vector<32x32xbf16>
      %cst_17 = arith.constant dense<0.000000e+00> : vector<32x32xf32>
      %32 = tpu.matmul %15, %26, %cst_17 {dimension_numbers = #tpu.dot_dimension_numbers<[1], [0], [0], [1], [0, 0, 1, 1], [], []>} : vector<32x8xbf16>, vector<8x32xbf16>, vector<32x32xf32> -> vector<32x32xf32>
      %33 = arith.truncf %32 : vector<32x32xf32> to vector<32x32xbf16>
      %34 = tpu.concatenate %31, %4, %33 in 1 : vector<32x32xbf16>, vector<32x32xbf16>, vector<32x32xbf16> -> vector<32x96xbf16>
      %c0_18 = arith.constant 0 : index
      %c0_19 = arith.constant 0 : index
      %35 = vector.load %arg7[%c0_18, %c0_19] : memref<96x33xbf16, #tpu.memory_space<vmem>>, vector<96x33xbf16>
      %cst_20 = arith.constant dense<0.000000e+00> : vector<32x33xf32>
      %36 = tpu.matmul %34, %35, %cst_20 {dimension_numbers = #tpu.dot_dimension_numbers<[1], [0], [0], [1], [0, 0, 1, 1], [], []>} : vector<32x96xbf16>, vector<96x33xbf16>, vector<32x33xf32> -> vector<32x33xf32>
      %37 = vector.broadcast %27 : vector<1x33xf32> to vector<32x33xf32>
      %38 = arith.addf %36, %37 : vector<32x33xf32>
      %39 = vector.extract_strided_slice %38 {offsets = [0, 0], sizes = [32, 32], strides = [1, 1]} : vector<32x33xf32> to vector<32x32xf32>
      %40 = arith.mulf %39, %39 : vector<32x32xf32>
      %41 = arith.mulf %39, %40 : vector<32x32xf32>
      %cst_21 = arith.constant 4.471500e-02 : f32
      %42 = vector.broadcast %cst_21 : f32 to vector<32x32xf32>
      %43 = arith.mulf %42, %41 : vector<32x32xf32>
      %44 = arith.addf %39, %43 : vector<32x32xf32>
      %cst_22 = arith.constant 0.797884583 : f32
      %45 = vector.broadcast %cst_22 : f32 to vector<32x32xf32>
      %46 = arith.mulf %45, %44 : vector<32x32xf32>
      %47 = math.tanh %46 : vector<32x32xf32>
      %cst_23 = arith.constant 1.000000e+00 : f32
      %48 = vector.broadcast %cst_23 : f32 to vector<32x32xf32>
      %49 = arith.addf %48, %47 : vector<32x32xf32>
      %cst_24 = arith.constant 5.000000e-01 : f32
      %50 = vector.broadcast %cst_24 : f32 to vector<32x32xf32>
      %51 = arith.mulf %50, %49 : vector<32x32xf32>
      %52 = arith.mulf %39, %51 : vector<32x32xf32>
      %53 = arith.truncf %52 : vector<32x32xf32> to vector<32x32xbf16>
      %c0_25 = arith.constant 0 : index
      %c0_26 = arith.constant 0 : index
      %54 = vector.load %arg8[%c0_25, %c0_26] : memref<32x32xbf16, #tpu.memory_space<vmem>>, vector<32x32xbf16>
      %cst_27 = arith.constant dense<0.000000e+00> : vector<32x32xf32>
      %55 = tpu.matmul %53, %54, %cst_27 {dimension_numbers = #tpu.dot_dimension_numbers<[1], [0], [0], [1], [0, 0, 1, 1], [], []>} : vector<32x32xbf16>, vector<32x32xbf16>, vector<32x32xf32> -> vector<32x32xf32>
      %56 = vector.broadcast %28 : vector<1x32xf32> to vector<32x32xf32>
      %57 = arith.addf %55, %56 : vector<32x32xf32>
      %58 = arith.mulf %57, %57 : vector<32x32xf32>
      %59 = arith.mulf %57, %58 : vector<32x32xf32>
      %cst_28 = arith.constant 4.471500e-02 : f32
      %60 = vector.broadcast %cst_28 : f32 to vector<32x32xf32>
      %61 = arith.mulf %60, %59 : vector<32x32xf32>
      %62 = arith.addf %57, %61 : vector<32x32xf32>
      %cst_29 = arith.constant 0.797884583 : f32
      %63 = vector.broadcast %cst_29 : f32 to vector<32x32xf32>
      %64 = arith.mulf %63, %62 : vector<32x32xf32>
      %65 = math.tanh %64 : vector<32x32xf32>
      %cst_30 = arith.constant 1.000000e+00 : f32
      %66 = vector.broadcast %cst_30 : f32 to vector<32x32xf32>
      %67 = arith.addf %66, %65 : vector<32x32xf32>
      %cst_31 = arith.constant 5.000000e-01 : f32
      %68 = vector.broadcast %cst_31 : f32 to vector<32x32xf32>
      %69 = arith.mulf %68, %67 : vector<32x32xf32>
      %70 = arith.mulf %57, %69 : vector<32x32xf32>
      %71 = arith.truncf %70 : vector<32x32xf32> to vector<32x32xbf16>
      %c0_32 = arith.constant 0 : index
      %c0_33 = arith.constant 0 : index
      %72 = vector.load %arg9[%c0_32, %c0_33] : memref<32x32xbf16, #tpu.memory_space<vmem>>, vector<32x32xbf16>
      %cst_34 = arith.constant dense<0.000000e+00> : vector<32x32xf32>
      %73 = tpu.matmul %71, %72, %cst_34 {dimension_numbers = #tpu.dot_dimension_numbers<[1], [0], [0], [1], [0, 0, 1, 1], [], []>} : vector<32x32xbf16>, vector<32x32xbf16>, vector<32x32xf32> -> vector<32x32xf32>
      %74 = vector.broadcast %29 : vector<1x32xf32> to vector<32x32xf32>
      %75 = arith.addf %73, %74 : vector<32x32xf32>
      %76 = vector.extract_strided_slice %38 {offsets = [0, 32], sizes = [32, 1], strides = [1, 1]} : vector<32x33xf32> to vector<32x1xf32>
      %cst_35 = arith.constant 0.000000e+00 : f32
      %77 = vector.broadcast %cst_35 : f32 to vector<32x1xf32>
      %78 = arith.cmpf oge, %76, %77 : vector<32x1xf32>
      %cst_36 = arith.constant 0.00999999977 : f32
      %79 = vector.broadcast %cst_36 : f32 to vector<32x1xf32>
      %80 = arith.mulf %79, %76 : vector<32x1xf32>
      %81 = arith.select %78, %76, %80 : vector<32x1xi1>, vector<32x1xf32>
      %82 = arith.negf %81 : vector<32x1xf32>
      %83 = math.exp %82 : vector<32x1xf32>
      %cst_37 = arith.constant 1.000000e+00 : f32
      %84 = vector.broadcast %cst_37 : f32 to vector<32x1xf32>
      %85 = arith.addf %84, %83 : vector<32x1xf32>
      %86 = arith.divf %84, %85 : vector<32x1xf32>
      %87 = math.exp %86 : vector<32x1xf32>
      %c32_i32 = arith.constant 32 : i32
      %88 = arith.muli %arg1, %c32_i32 : i32
      %89 = tpu.iota {dimensions = array<i32: 0>} : vector<32x1xi32>
      %90 = vector.broadcast %88 : i32 to vector<32x1xi32>
      %91 = arith.addi %90, %89 : vector<32x1xi32>
      %c32_i32_38 = arith.constant 32 : i32
      %92 = vector.broadcast %c32_i32_38 : i32 to vector<32x1xi32>
      %93 = arith.cmpi slt, %91, %92 : vector<32x1xi32>
      %cst_39 = arith.constant 0.000000e+00 : f32
      %94 = vector.broadcast %cst_39 : f32 to vector<32x1xf32>
      %95 = arith.select %93, %87, %94 : vector<32x1xi1>, vector<32x1xf32>
      %c0_40 = arith.constant 0 : index
      %c0_41 = arith.constant 0 : index
      %96 = vector.load %arg20[%c0_40, %c0_41] : memref<1x1xf32, #tpu.memory_space<vmem>>, vector<1x1xf32>
      %97 = vector.shape_cast %95 : vector<32x1xf32> to vector<1x32x1xf32>
      %cst_42 = arith.constant dense<0.000000e+00> : vector<1xf32>
      %98 = vector.multi_reduction <add>, %97, %cst_42 [1, 2] : vector<1x32x1xf32> to vector<1xf32>
      %99 = vector.shape_cast %98 : vector<1xf32> to vector<1x1x1xf32>
      %100 = vector.extract %99[0, 0, 0] : f32 from vector<1x1x1xf32>
      %101 = vector.broadcast %100 : f32 to vector<1x1xf32>
      %102 = arith.addf %96, %101 : vector<1x1xf32>
      %c0_43 = arith.constant 0 : index
      %c0_44 = arith.constant 0 : index
      %103 = vector.load %arg20[%c0_43, %c0_44] : memref<1x1xf32, #tpu.memory_space<vmem>>, vector<1x1xf32>
      tpu.vector_store %arg20[%c0_43, %c0_44], %102 {strides = array<i32>} : memref<1x1xf32, #tpu.memory_space<vmem>>, vector<1x1xf32>,
      %104 = vector.broadcast %95 : vector<32x1xf32> to vector<32x32xf32>
      %105 = arith.mulf %75, %104 : vector<32x32xf32>
      %106 = arith.truncf %105 : vector<32x32xf32> to vector<32x32xbf16>
      %107 = tpu.iota {dimensions = array<i32: 0>} : vector<8x32xi32>
      %108 = vector.broadcast %2 : vector<1x32xi32> to vector<8x32xi32>
      %109 = arith.cmpi eq, %107, %108 : vector<8x32xi32>
      %110 = arith.extui %109 : vector<8x32xi1> to vector<8x32xi32>
      %111 = arith.sitofp %110 : vector<8x32xi32> to vector<8x32xf32>
      %112 = arith.truncf %111 : vector<8x32xf32> to vector<8x32xbf16>
      %c0_45 = arith.constant 0 : index
      %c0_46 = arith.constant 0 : index
      %113 = vector.load %arg18[%c0_45, %c0_46] : memref<8x32xf32, #tpu.memory_space<vmem>>, vector<8x32xf32>
      %cst_47 = arith.constant dense<0.000000e+00> : vector<8x32xf32>
      %114 = tpu.matmul %112, %106, %cst_47 {dimension_numbers = #tpu.dot_dimension_numbers<[1], [0], [0], [1], [0, 0, 1, 1], [], []>} : vector<8x32xbf16>, vector<32x32xbf16>, vector<8x32xf32> -> vector<8x32xf32>
      %115 = arith.addf %113, %114 : vector<8x32xf32>
      %c0_48 = arith.constant 0 : index
      %c0_49 = arith.constant 0 : index
      %116 = vector.load %arg18[%c0_48, %c0_49] : memref<8x32xf32, #tpu.memory_space<vmem>>, vector<8x32xf32>
      tpu.vector_store %arg18[%c0_48, %c0_49], %115 {strides = array<i32>} : memref<8x32xf32, #tpu.memory_space<vmem>>, vector<8x32xf32>,
      %c0_i32_50 = arith.constant 0 : i32
      %117 = arith.cmpi eq, %arg1, %c0_i32_50 : i32
      %118 = arith.extui %117 : i1 to i32
      %c0_i32_51 = arith.constant 0 : i32
      %119 = arith.cmpi ne, %118, %c0_i32_51 : i32
      scf.if %119 {
        %c0_52 = arith.constant 0 : index
        %c0_53 = arith.constant 0 : index
        %120 = vector.load %arg18[%c0_52, %c0_53] : memref<8x32xf32, #tpu.memory_space<vmem>>, vector<8x32xf32>
        %c0_54 = arith.constant 0 : index
        %c0_55 = arith.constant 0 : index
        %121 = vector.load %arg20[%c0_54, %c0_55] : memref<1x1xf32, #tpu.memory_space<vmem>>, vector<1x1xf32>
        %cst_56 = arith.constant 3.000000e+01 : f32
        %122 = vector.broadcast %cst_56 : f32 to vector<1x1xf32>
        %123 = arith.mulf %121, %122 : vector<1x1xf32>
        %124 = vector.broadcast %123 : vector<1x1xf32> to vector<8x32xf32>
        %125 = arith.divf %120, %124 : vector<8x32xf32>
        %c0_57 = arith.constant 0 : index
        %c0_58 = arith.constant 0 : index
        %126 = vector.load %arg5[%c0_57, %c0_58] : memref<8x32xf32, #tpu.memory_space<vmem>>, vector<8x32xf32>
        %127 = arith.addf %126, %125 : vector<8x32xf32>
        %c3 = arith.constant 3 : index
        %c0_59 = arith.constant 0 : index
        %128 = vector.load %arg15[%c3, %c0_59] : memref<14x128xf32, #tpu.memory_space<vmem>>, vector<1x32xf32>
        %c4 = arith.constant 4 : index
        %c0_60 = arith.constant 0 : index
        %129 = vector.load %arg15[%c4, %c0_60] : memref<14x128xf32, #tpu.memory_space<vmem>>, vector<1x32xf32>
        %cst_61 = arith.constant dense<0.000000e+00> : vector<8xf32>
        %130 = vector.multi_reduction <add>, %127, %cst_61 [1] : vector<8x32xf32> to vector<8xf32>
        %131 = vector.shape_cast %130 : vector<8xf32> to vector<8x1xf32>
        %cst_62 = arith.constant 3.200000e+01 : f32
        %132 = vector.broadcast %cst_62 : f32 to vector<8x1xf32>
        %133 = arith.divf %131, %132 : vector<8x1xf32>
        %134 = vector.broadcast %133 : vector<8x1xf32> to vector<8x32xf32>
        %135 = arith.subf %127, %134 : vector<8x32xf32>
        %136 = arith.mulf %135, %135 : vector<8x32xf32>
        %cst_63 = arith.constant dense<0.000000e+00> : vector<8xf32>
        %137 = vector.multi_reduction <add>, %136, %cst_63 [1] : vector<8x32xf32> to vector<8xf32>
        %138 = vector.shape_cast %137 : vector<8xf32> to vector<8x1xf32>
        %cst_64 = arith.constant 3.200000e+01 : f32
        %139 = vector.broadcast %cst_64 : f32 to vector<8x1xf32>
        %140 = arith.divf %138, %139 : vector<8x1xf32>
        %141 = vector.broadcast %133 : vector<8x1xf32> to vector<8x32xf32>
        %142 = arith.subf %127, %141 : vector<8x32xf32>
        %cst_65 = arith.constant 9.99999974E-6 : f32
        %143 = vector.broadcast %cst_65 : f32 to vector<8x1xf32>
        %144 = arith.addf %140, %143 : vector<8x1xf32>
        %145 = math.rsqrt %144 : vector<8x1xf32>
        %146 = vector.broadcast %145 : vector<8x1xf32> to vector<8x32xf32>
        %147 = arith.mulf %142, %146 : vector<8x32xf32>
        %148 = vector.broadcast %128 : vector<1x32xf32> to vector<8x32xf32>
        %149 = arith.mulf %147, %148 : vector<8x32xf32>
        %150 = vector.broadcast %129 : vector<1x32xf32> to vector<8x32xf32>
        %151 = arith.addf %149, %150 : vector<8x32xf32>
        %152 = arith.truncf %151 : vector<8x32xf32> to vector<8x32xbf16>
        %c0_66 = arith.constant 0 : index
        %c0_67 = arith.constant 0 : index
        %153 = vector.load %arg10[%c0_66, %c0_67] : memref<32x128xbf16, #tpu.memory_space<vmem>>, vector<32x128xbf16>
        %cst_68 = arith.constant dense<0.000000e+00> : vector<8x128xf32>
        %154 = tpu.matmul %152, %153, %cst_68 {dimension_numbers = #tpu.dot_dimension_numbers<[1], [0], [0], [1], [0, 0, 1, 1], [], []>} : vector<8x32xbf16>, vector<32x128xbf16>, vector<8x128xf32> -> vector<8x128xf32>
        %c5 = arith.constant 5 : index
        %c0_69 = arith.constant 0 : index
        %155 = vector.load %arg15[%c5, %c0_69] : memref<14x128xf32, #tpu.memory_space<vmem>>, vector<1x128xf32>
        %156 = vector.broadcast %155 : vector<1x128xf32> to vector<8x128xf32>
        %157 = arith.addf %154, %156 : vector<8x128xf32>
        %cst_70 = arith.constant 0.000000e+00 : f32
        %158 = vector.broadcast %cst_70 : f32 to vector<8x128xf32>
        %159 = arith.maximumf %157, %158 : vector<8x128xf32>
        %160 = arith.truncf %159 : vector<8x128xf32> to vector<8x128xbf16>
        %c0_71 = arith.constant 0 : index
        %c0_72 = arith.constant 0 : index
        %161 = vector.load %arg11[%c0_71, %c0_72] : memref<128x32xbf16, #tpu.memory_space<vmem>>, vector<128x32xbf16>
        %cst_73 = arith.constant dense<0.000000e+00> : vector<8x32xf32>
        %162 = tpu.matmul %160, %161, %cst_73 {dimension_numbers = #tpu.dot_dimension_numbers<[1], [0], [0], [1], [0, 0, 1, 1], [], []>} : vector<8x128xbf16>, vector<128x32xbf16>, vector<8x32xf32> -> vector<8x32xf32>
        %c6 = arith.constant 6 : index
        %c0_74 = arith.constant 0 : index
        %163 = vector.load %arg15[%c6, %c0_74] : memref<14x128xf32, #tpu.memory_space<vmem>>, vector<1x32xf32>
        %164 = vector.broadcast %163 : vector<1x32xf32> to vector<8x32xf32>
        %165 = arith.addf %162, %164 : vector<8x32xf32>
        %166 = arith.addf %151, %165 : vector<8x32xf32>
        %c7 = arith.constant 7 : index
        %c0_75 = arith.constant 0 : index
        %167 = vector.load %arg15[%c7, %c0_75] : memref<14x128xf32, #tpu.memory_space<vmem>>, vector<1x32xf32>
        %c8 = arith.constant 8 : index
        %c0_76 = arith.constant 0 : index
        %168 = vector.load %arg15[%c8, %c0_76] : memref<14x128xf32, #tpu.memory_space<vmem>>, vector<1x32xf32>
        %cst_77 = arith.constant dense<0.000000e+00> : vector<8xf32>
        %169 = vector.multi_reduction <add>, %166, %cst_77 [1] : vector<8x32xf32> to vector<8xf32>
        %170 = vector.shape_cast %169 : vector<8xf32> to vector<8x1xf32>
        %cst_78 = arith.constant 3.200000e+01 : f32
        %171 = vector.broadcast %cst_78 : f32 to vector<8x1xf32>
        %172 = arith.divf %170, %171 : vector<8x1xf32>
        %173 = vector.broadcast %172 : vector<8x1xf32> to vector<8x32xf32>
        %174 = arith.subf %166, %173 : vector<8x32xf32>
        %175 = arith.mulf %174, %174 : vector<8x32xf32>
        %cst_79 = arith.constant dense<0.000000e+00> : vector<8xf32>
        %176 = vector.multi_reduction <add>, %175, %cst_79 [1] : vector<8x32xf32> to vector<8xf32>
        %177 = vector.shape_cast %176 : vector<8xf32> to vector<8x1xf32>
        %cst_80 = arith.constant 3.200000e+01 : f32
        %178 = vector.broadcast %cst_80 : f32 to vector<8x1xf32>
        %179 = arith.divf %177, %178 : vector<8x1xf32>
        %180 = vector.broadcast %172 : vector<8x1xf32> to vector<8x32xf32>
        %181 = arith.subf %166, %180 : vector<8x32xf32>
        %cst_81 = arith.constant 9.99999974E-6 : f32
        %182 = vector.broadcast %cst_81 : f32 to vector<8x1xf32>
        %183 = arith.addf %179, %182 : vector<8x1xf32>
        %184 = math.rsqrt %183 : vector<8x1xf32>
        %185 = vector.broadcast %184 : vector<8x1xf32> to vector<8x32xf32>
        %186 = arith.mulf %181, %185 : vector<8x32xf32>
        %187 = vector.broadcast %167 : vector<1x32xf32> to vector<8x32xf32>
        %188 = arith.mulf %186, %187 : vector<8x32xf32>
        %189 = vector.broadcast %168 : vector<1x32xf32> to vector<8x32xf32>
        %190 = arith.addf %188, %189 : vector<8x32xf32>
        %c0_82 = arith.constant 0 : index
        %c0_83 = arith.constant 0 : index
        %191 = vector.load %arg19[%c0_82, %c0_83] : memref<8x32xf32, #tpu.memory_space<vmem>>, vector<8x32xf32>
        tpu.vector_store %arg19[%c0_82, %c0_83], %190 {strides = array<i32>} : memref<8x32xf32, #tpu.memory_space<vmem>>, vector<8x32xf32>,
        %c0_84 = arith.constant 0 : index
        %c0_85 = arith.constant 0 : index
        %192 = vector.load %arg16[%c0_84, %c0_85] : memref<8x32xf32, #tpu.memory_space<vmem>>, vector<8x32xf32>
        tpu.vector_store %arg16[%c0_84, %c0_85], %190 {strides = array<i32>} : memref<8x32xf32, #tpu.memory_space<vmem>>, vector<8x32xf32>,
      } else {
      }
    } else {
    }
    %c1_i32 = arith.constant 1 : i32
    %19 = arith.cmpi eq, %arg0, %c1_i32 : i32
    %20 = arith.extui %19 : i1 to i32
    %c0_i32_8 = arith.constant 0 : i32
    %21 = arith.cmpi ne, %20, %c0_i32_8 : i32
    scf.if %21 {
      %c0_9 = arith.constant 0 : index
      %c0_10 = arith.constant 0 : index
      %22 = vector.load %arg19[%c0_9, %c0_10] : memref<8x32xf32, #tpu.memory_space<vmem>>, vector<8x32xf32>
      %23 = arith.truncf %22 : vector<8x32xf32> to vector<8x32xbf16>
      %c9 = arith.constant 9 : index
      %c0_11 = arith.constant 0 : index
      %24 = vector.load %arg15[%c9, %c0_11] : memref<14x128xf32, #tpu.memory_space<vmem>>, vector<1x32xf32>
      %c10 = arith.constant 10 : index
      %c0_12 = arith.constant 0 : index
      %25 = vector.load %arg15[%c10, %c0_12] : memref<14x128xf32, #tpu.memory_space<vmem>>, vector<1x32xf32>
      %c11 = arith.constant 11 : index
      %c0_13 = arith.constant 0 : index
      %26 = vector.load %arg15[%c11, %c0_13] : memref<14x128xf32, #tpu.memory_space<vmem>>, vector<1x32xf32>
      %cst = arith.constant dense<0.000000e+00> : vector<32x32xf32>
      %27 = tpu.matmul %10, %23, %cst {dimension_numbers = #tpu.dot_dimension_numbers<[1], [0], [0], [1], [0, 0, 1, 1], [], []>} : vector<32x8xbf16>, vector<8x32xbf16>, vector<32x32xf32> -> vector<32x32xf32>
      %28 = arith.truncf %27 : vector<32x32xf32> to vector<32x32xbf16>
      %cst_14 = arith.constant dense<0.000000e+00> : vector<32x32xf32>
      %29 = tpu.matmul %15, %23, %cst_14 {dimension_numbers = #tpu.dot_dimension_numbers<[1], [0], [0], [1], [0, 0, 1, 1], [], []>} : vector<32x8xbf16>, vector<8x32xbf16>, vector<32x32xf32> -> vector<32x32xf32>
      %30 = arith.truncf %29 : vector<32x32xf32> to vector<32x32xbf16>
      %31 = tpu.concatenate %28, %4, %30 in 1 : vector<32x32xbf16>, vector<32x32xbf16>, vector<32x32xbf16> -> vector<32x96xbf16>
      %c0_15 = arith.constant 0 : index
      %c0_16 = arith.constant 0 : index
      %32 = vector.load %arg12[%c0_15, %c0_16] : memref<96x32xbf16, #tpu.memory_space<vmem>>, vector<96x32xbf16>
      %cst_17 = arith.constant dense<0.000000e+00> : vector<32x32xf32>
      %33 = tpu.matmul %31, %32, %cst_17 {dimension_numbers = #tpu.dot_dimension_numbers<[1], [0], [0], [1], [0, 0, 1, 1], [], []>} : vector<32x96xbf16>, vector<96x32xbf16>, vector<32x32xf32> -> vector<32x32xf32>
      %34 = vector.broadcast %24 : vector<1x32xf32> to vector<32x32xf32>
      %35 = arith.addf %33, %34 : vector<32x32xf32>
      %36 = arith.mulf %35, %35 : vector<32x32xf32>
      %37 = arith.mulf %35, %36 : vector<32x32xf32>
      %cst_18 = arith.constant 4.471500e-02 : f32
      %38 = vector.broadcast %cst_18 : f32 to vector<32x32xf32>
      %39 = arith.mulf %38, %37 : vector<32x32xf32>
      %40 = arith.addf %35, %39 : vector<32x32xf32>
      %cst_19 = arith.constant 0.797884583 : f32
      %41 = vector.broadcast %cst_19 : f32 to vector<32x32xf32>
      %42 = arith.mulf %41, %40 : vector<32x32xf32>
      %43 = math.tanh %42 : vector<32x32xf32>
      %cst_20 = arith.constant 1.000000e+00 : f32
      %44 = vector.broadcast %cst_20 : f32 to vector<32x32xf32>
      %45 = arith.addf %44, %43 : vector<32x32xf32>
      %cst_21 = arith.constant 5.000000e-01 : f32
      %46 = vector.broadcast %cst_21 : f32 to vector<32x32xf32>
      %47 = arith.mulf %46, %45 : vector<32x32xf32>
      %48 = arith.mulf %35, %47 : vector<32x32xf32>
      %49 = arith.truncf %48 : vector<32x32xf32> to vector<32x32xbf16>
      %c0_22 = arith.constant 0 : index
      %c0_23 = arith.constant 0 : index
      %50 = vector.load %arg13[%c0_22, %c0_23] : memref<32x32xbf16, #tpu.memory_space<vmem>>, vector<32x32xbf16>
      %cst_24 = arith.constant dense<0.000000e+00> : vector<32x32xf32>
      %51 = tpu.matmul %49, %50, %cst_24 {dimension_numbers = #tpu.dot_dimension_numbers<[1], [0], [0], [1], [0, 0, 1, 1], [], []>} : vector<32x32xbf16>, vector<32x32xbf16>, vector<32x32xf32> -> vector<32x32xf32>
      %52 = vector.broadcast %25 : vector<1x32xf32> to vector<32x32xf32>
      %53 = arith.addf %51, %52 : vector<32x32xf32>
      %54 = arith.mulf %53, %53 : vector<32x32xf32>
      %55 = arith.mulf %53, %54 : vector<32x32xf32>
      %cst_25 = arith.constant 4.471500e-02 : f32
      %56 = vector.broadcast %cst_25 : f32 to vector<32x32xf32>
      %57 = arith.mulf %56, %55 : vector<32x32xf32>
      %58 = arith.addf %53, %57 : vector<32x32xf32>
      %cst_26 = arith.constant 0.797884583 : f32
      %59 = vector.broadcast %cst_26 : f32 to vector<32x32xf32>
      %60 = arith.mulf %59, %58 : vector<32x32xf32>
      %61 = math.tanh %60 : vector<32x32xf32>
      %cst_27 = arith.constant 1.000000e+00 : f32
      %62 = vector.broadcast %cst_27 : f32 to vector<32x32xf32>
      %63 = arith.addf %62, %61 : vector<32x32xf32>
      %cst_28 = arith.constant 5.000000e-01 : f32
      %64 = vector.broadcast %cst_28 : f32 to vector<32x32xf32>
      %65 = arith.mulf %64, %63 : vector<32x32xf32>
      %66 = arith.mulf %53, %65 : vector<32x32xf32>
      %67 = arith.truncf %66 : vector<32x32xf32> to vector<32x32xbf16>
      %c0_29 = arith.constant 0 : index
      %c0_30 = arith.constant 0 : index
      %68 = vector.load %arg14[%c0_29, %c0_30] : memref<32x32xbf16, #tpu.memory_space<vmem>>, vector<32x32xbf16>
      %cst_31 = arith.constant dense<0.000000e+00> : vector<32x32xf32>
      %69 = tpu.matmul %67, %68, %cst_31 {dimension_numbers = #tpu.dot_dimension_numbers<[1], [0], [0], [1], [0, 0, 1, 1], [], []>} : vector<32x32xbf16>, vector<32x32xbf16>, vector<32x32xf32> -> vector<32x32xf32>
      %70 = vector.broadcast %26 : vector<1x32xf32> to vector<32x32xf32>
      %71 = arith.addf %69, %70 : vector<32x32xf32>
      %72 = arith.addf %3, %71 : vector<32x32xf32>
      %c12 = arith.constant 12 : index
      %c0_32 = arith.constant 0 : index
      %73 = vector.load %arg15[%c12, %c0_32] : memref<14x128xf32, #tpu.memory_space<vmem>>, vector<1x32xf32>
      %c13 = arith.constant 13 : index
      %c0_33 = arith.constant 0 : index
      %74 = vector.load %arg15[%c13, %c0_33] : memref<14x128xf32, #tpu.memory_space<vmem>>, vector<1x32xf32>
      %cst_34 = arith.constant dense<0.000000e+00> : vector<32xf32>
      %75 = vector.multi_reduction <add>, %72, %cst_34 [1] : vector<32x32xf32> to vector<32xf32>
      %76 = vector.shape_cast %75 : vector<32xf32> to vector<32x1xf32>
      %cst_35 = arith.constant 3.200000e+01 : f32
      %77 = vector.broadcast %cst_35 : f32 to vector<32x1xf32>
      %78 = arith.divf %76, %77 : vector<32x1xf32>
      %79 = vector.broadcast %78 : vector<32x1xf32> to vector<32x32xf32>
      %80 = arith.subf %72, %79 : vector<32x32xf32>
      %81 = arith.mulf %80, %80 : vector<32x32xf32>
      %cst_36 = arith.constant dense<0.000000e+00> : vector<32xf32>
      %82 = vector.multi_reduction <add>, %81, %cst_36 [1] : vector<32x32xf32> to vector<32xf32>
      %83 = vector.shape_cast %82 : vector<32xf32> to vector<32x1xf32>
      %cst_37 = arith.constant 3.200000e+01 : f32
      %84 = vector.broadcast %cst_37 : f32 to vector<32x1xf32>
      %85 = arith.divf %83, %84 : vector<32x1xf32>
      %86 = vector.broadcast %78 : vector<32x1xf32> to vector<32x32xf32>
      %87 = arith.subf %72, %86 : vector<32x32xf32>
      %cst_38 = arith.constant 9.99999974E-6 : f32
      %88 = vector.broadcast %cst_38 : f32 to vector<32x1xf32>
      %89 = arith.addf %85, %88 : vector<32x1xf32>
      %90 = math.rsqrt %89 : vector<32x1xf32>
      %91 = vector.broadcast %90 : vector<32x1xf32> to vector<32x32xf32>
      %92 = arith.mulf %87, %91 : vector<32x32xf32>
      %93 = vector.broadcast %73 : vector<1x32xf32> to vector<32x32xf32>
      %94 = arith.mulf %92, %93 : vector<32x32xf32>
      %95 = vector.broadcast %74 : vector<1x32xf32> to vector<32x32xf32>
      %96 = arith.addf %94, %95 : vector<32x32xf32>
      %c0_39 = arith.constant 0 : index
      %c0_40 = arith.constant 0 : index
      %97 = vector.load %arg17[%c0_39, %c0_40] : memref<32x32xf32, #tpu.memory_space<vmem>>, vector<32x32xf32>
      tpu.vector_store %arg17[%c0_39, %c0_40], %96 {strides = array<i32>} : memref<32x32xf32, #tpu.memory_space<vmem>>, vector<32x32xf32>,
    } else {
    }
    return
  }
  func.func @transform_0(%arg0: i32, %arg1: i32) -> (i32, i32) {
    %c0_i32 = arith.constant 0 : i32
    %c0_i32_0 = arith.constant 0 : i32
    return %arg1, %c0_i32 : i32, i32
  }
  func.func @transform_1(%arg0: i32, %arg1: i32) -> (i32, i32) {
    %c0_i32 = arith.constant 0 : i32
    %c0_i32_0 = arith.constant 0 : i32
    return %arg1, %c0_i32 : i32, i32
  }
  func.func @transform_2(%arg0: i32, %arg1: i32) -> (i32, i32) {
    %c0_i32 = arith.constant 0 : i32
    %c0_i32_0 = arith.constant 0 : i32
    return %c0_i32, %arg1 : i32, i32
  }
  func.func @transform_3(%arg0: i32, %arg1: i32) -> (i32, i32) {
    %c0_i32 = arith.constant 0 : i32
    %c0_i32_0 = arith.constant 0 : i32
    %c0_i32_1 = arith.constant 0 : i32
    return %c0_i32, %c0_i32_0 : i32, i32
  }
  func.func @transform_4(%arg0: i32, %arg1: i32) -> (i32, i32) {
    %c0_i32 = arith.constant 0 : i32
    %c0_i32_0 = arith.constant 0 : i32
    return %arg1, %c0_i32 : i32, i32
  }
  func.func @transform_5(%arg0: i32, %arg1: i32) -> (i32, i32) {
    %c0_i32 = arith.constant 0 : i32
    %c0_i32_0 = arith.constant 0 : i32
    %c0_i32_1 = arith.constant 0 : i32
    return %c0_i32, %c0_i32_0 : i32, i32
  }
  func.func @transform_6(%arg0: i32, %arg1: i32) -> (i32, i32) {
    %c0_i32 = arith.constant 0 : i32
    %c0_i32_0 = arith.constant 0 : i32
    %c0_i32_1 = arith.constant 0 : i32
    return %c0_i32, %c0_i32_0 : i32, i32
  }
  func.func @transform_7(%arg0: i32, %arg1: i32) -> (i32, i32) {
    %c0_i32 = arith.constant 0 : i32
    %c0_i32_0 = arith.constant 0 : i32
    %c0_i32_1 = arith.constant 0 : i32
    return %c0_i32, %c0_i32_0 : i32, i32
  }
  func.func @transform_8(%arg0: i32, %arg1: i32) -> (i32, i32) {
    %c0_i32 = arith.constant 0 : i32
    %c0_i32_0 = arith.constant 0 : i32
    %c0_i32_1 = arith.constant 0 : i32
    return %c0_i32, %c0_i32_0 : i32, i32
  }
  func.func @transform_9(%arg0: i32, %arg1: i32) -> (i32, i32) {
    %c0_i32 = arith.constant 0 : i32
    %c0_i32_0 = arith.constant 0 : i32
    %c0_i32_1 = arith.constant 0 : i32
    return %c0_i32, %c0_i32_0 : i32, i32
  }
  func.func @transform_10(%arg0: i32, %arg1: i32) -> (i32, i32) {
    %c0_i32 = arith.constant 0 : i32
    %c0_i32_0 = arith.constant 0 : i32
    %c0_i32_1 = arith.constant 0 : i32
    return %c0_i32, %c0_i32_0 : i32, i32
  }
  func.func @transform_11(%arg0: i32, %arg1: i32) -> (i32, i32) {
    %c0_i32 = arith.constant 0 : i32
    %c0_i32_0 = arith.constant 0 : i32
    %c0_i32_1 = arith.constant 0 : i32
    return %c0_i32, %c0_i32_0 : i32, i32
  }
  func.func @transform_12(%arg0: i32, %arg1: i32) -> (i32, i32) {
    %c0_i32 = arith.constant 0 : i32
    %c0_i32_0 = arith.constant 0 : i32
    %c0_i32_1 = arith.constant 0 : i32
    return %c0_i32, %c0_i32_0 : i32, i32
  }
  func.func @transform_13(%arg0: i32, %arg1: i32) -> (i32, i32) {
    %c0_i32 = arith.constant 0 : i32
    %c0_i32_0 = arith.constant 0 : i32
    %c0_i32_1 = arith.constant 0 : i32
    return %c0_i32, %c0_i32_0 : i32, i32
  }
  func.func @transform_14(%arg0: i32, %arg1: i32) -> (i32, i32) {
    %c0_i32 = arith.constant 0 : i32
    %c0_i32_0 = arith.constant 0 : i32
    %c0_i32_1 = arith.constant 0 : i32
    return %c0_i32, %c0_i32_0 : i32, i32
  }
  func.func @transform_15(%arg0: i32, %arg1: i32) -> (i32, i32) {
    %0 = arith.muli %arg0, %arg1 : i32
    %c0_i32 = arith.constant 0 : i32
    %c0_i32_0 = arith.constant 0 : i32
    return %0, %c0_i32 : i32, i32
  }
}

</mosaic_0001>

<llo_original>
// kernel: tpu_custom_call.1
$region0: #{tpu_custom_call.1}
  #allocation0 [shape = 'u32[]', space=smem, size = 0x4, offset = 0x4, fixed_abs, tag = 'smem constant byte address 0x4 - core index']
  #allocation1 [shape = 'u32[144,128]{1,0:T(1,128)}', space=vmem, size = 0x12000, scoped, tag = 'internal scratch']
  #allocation2 [shape = 'f32[8,32]{1,0:T(8,128)}', space=vmem, size = 0x1000, scoped, tag = 'scratch operand']
  #allocation3 [shape = 'f32[8,32]{1,0:T(8,128)}', space=vmem, size = 0x1000, scoped, tag = 'scratch operand']
  #allocation4 [shape = 'f32[1,1]{1,0:T(1,128)}', space=vmem, size = 0x200, scoped, tag = 'scratch operand']
  %s0 = inlined_call_operand.vmem [shape: s32[32,1], index: 0, kind: input, shape index: {}]
  %s1 = inlined_call_operand.vmem [shape: s32[32,1], index: 1, kind: input, shape index: {}]
  %s2 = inlined_call_operand.vmem [shape: s32[1,32], index: 2, kind: input, shape index: {}]
  %s3 = inlined_call_operand.vmem [shape: f32[8,32], index: 3, kind: input, shape index: {}]
  %s4 = inlined_call_operand.vmem [shape: f32[32,32], index: 4, kind: input, shape index: {}]
  %s5 = inlined_call_operand.vmem [shape: bf16[96,33], index: 5, kind: input, shape index: {}]
  %s6 = inlined_call_operand.vmem [shape: bf16[32,32], index: 6, kind: input, shape index: {}]
  %s7 = inlined_call_operand.vmem [shape: bf16[32,32], index: 7, kind: input, shape index: {}]
  %s8 = inlined_call_operand.vmem [shape: bf16[32,128], index: 8, kind: input, shape index: {}]
  %s9 = inlined_call_operand.vmem [shape: bf16[128,32], index: 9, kind: input, shape index: {}]
  %s10 = inlined_call_operand.vmem [shape: bf16[96,32], index: 10, kind: input, shape index: {}]
  %s11 = inlined_call_operand.vmem [shape: bf16[32,32], index: 11, kind: input, shape index: {}]
  %s12 = inlined_call_operand.vmem [shape: bf16[32,32], index: 12, kind: input, shape index: {}]
  %s13 = inlined_call_operand.vmem [shape: f32[14,128], index: 13, kind: input, shape index: {}]
  %s14 = inlined_call_operand.hbm [shape: f32[8,32], index: 14, kind: output, shape index: {0}]
  %s15 = inlined_call_operand.hbm [shape: f32[32,32], index: 15, kind: output, shape index: {1}]
  %16 = xla_tuple %s14, %s15
  %s17 = sld [smem:[#allocation0]]
  $region113: #{tpu_custom_call.1} parent=0
    _
  %s19 = ssub.s32 1, %s17
  %s20 = scalar_select 0, %s19, %s17
  $region1: #{tpu_custom_call.1} parent=0
    #allocation5 [shape = 'u8[4096]{0}', space=vmem, size = 0x1000, scoped, tag = 'output window, operand 0, single buffered']
    #allocation6 [shape = 's32[2]{0}', space=sflag, size = 0x8, scoped, tag = 'scoped memory for tpu_custom_call.1']
    #allocation7 [shape = 'u8[32768]{0}', space=vmem, size = 0x8000, scoped, tag = 'output window, operand 1']
    #allocation8 [shape = 's32[2]{0}', space=sflag, size = 0x8, scoped, tag = 'scoped memory for tpu_custom_call.1']
    %21 = vsyncpa [#allocation6], 0
    %22 = vsyncpa [#allocation8], 0
    %s23 = scalar_lea.sflag [#allocation8], 1
    %24 = vsyncpa %s23, 0
    loop: start=0, step=1, limit=4
    $region2: #{tpu_custom_call.1} parent=1 // loop_pre_header
      _
    $region3: #{tpu_custom_call.1} parent=1 // loop_header
      %s26 = sphi 0, %s30
      %p27 = scmp.ge.s32.totalorder %s26, 4
      %s33 = sphi 0, %s45
      %s34 = sphi 0, %s41
      %s35 = sphi 0, %s33
      %s36 = sphi 0, %s34
      %s37 = sphi 0, %s35
      %s38 = sphi 0, %s36
      %s48 = sphi 0, %s50
      %s51 = sphi 0, %s48
      %s52 = sphi 0, %s51
      %s68 = sphi 0, %s52
      %s74 = sphi 0, %s76
      %s77 = sphi 0, %s74
      %s78 = sphi 0, %s77
      %s94 = sphi 0, %s78
      %s100 = sphi 0, %s102
      %s103 = sphi 0, %s100
      %s104 = sphi 0, %s103
      %s120 = sphi 0, %s104
      %s124 = sphi 0, %s124
      %s126 = sphi 0, %s124
      %s127 = sphi 0, %s126
      %s141 = sphi 0, %s127
      %s147 = sphi 0, %s149
      %s150 = sphi 0, %s147
      %s151 = sphi 0, %s150
      %s167 = sphi 0, %s151
      %s171 = sphi 0, %s171
      %s173 = sphi 0, %s171
      %s174 = sphi 0, %s173
      %s188 = sphi 0, %s174
      %s192 = sphi 0, %s192
      %s194 = sphi 0, %s192
      %s195 = sphi 0, %s194
      %s209 = sphi 0, %s195
      %s213 = sphi 0, %s213
      %s215 = sphi 0, %s213
      %s216 = sphi 0, %s215
      %s230 = sphi 0, %s216
      %s234 = sphi 0, %s234
      %s236 = sphi 0, %s234
      %s237 = sphi 0, %s236
      %s251 = sphi 0, %s237
      %s255 = sphi 0, %s255
      %s257 = sphi 0, %s255
      %s258 = sphi 0, %s257
      %s272 = sphi 0, %s258
      %s276 = sphi 0, %s276
      %s278 = sphi 0, %s276
      %s279 = sphi 0, %s278
      %s293 = sphi 0, %s279
      %s297 = sphi 0, %s297
      %s299 = sphi 0, %s297
      %s300 = sphi 0, %s299
      %s314 = sphi 0, %s300
      %s318 = sphi 0, %s318
      %s320 = sphi 0, %s318
      %s321 = sphi 0, %s320
      %s335 = sphi 0, %s321
      %s339 = sphi 0, %s339
      %s341 = sphi 0, %s339
      %s342 = sphi 0, %s341
      %s356 = sphi 0, %s342
      %s360 = sphi 0, %s360
      %s362 = sphi 0, %s360
      %s363 = sphi 0, %s362
      %s377 = sphi 0, %s363
      %s385 = sphi 0, %s387
      %s388 = sphi 0, %s385
      %s389 = sphi 0, %s388
      %s405 = sphi 0, %s389
    $region4: #{tpu_custom_call.1} parent=1 // loop_header_branch
      %29 = sbr.rel (%p27) target = $region8
    $region5: #{tpu_custom_call.1} parent=1 // loop_body
      %s31 = ssub.s32 %s26, 1
      %s32 = ssub.s32 %s26, 2
      %s39 = sadd.s32 1, %s34
      %p40 = scmp.ge.s32.totalorder %s39, 1
      %s41 = scalar_select %p40, 0, %s39
      %s42 = sadd.s32 1, %s33
      %s43 = scalar_select %p40, %s42, %s33
      %p44 = scmp.ge.s32.totalorder %s43, 2
      %s45 = scalar_select %p44, 0, %s43
      %s46 = ssub.s32 %s34, %s41
      %p47 = scmp.eq.s32.totalorder %s46, 0
      %s49 = sadd.s32 %s48, 1
      %s50 = scalar_select %p47, %s48, %s49
      %p53 = pneg %p47
      %p54 = scmp.eq.s32.totalorder %s26, 1
      %p55 = por %p53, %p54
      %p56 = scmp.ne.s32.totalorder %s48, %s51
      %p57 = scmp.eq.s32.totalorder %s26, 0
      %p58 = por %p56, %p57
      %p59 = scmp.ne.s32.totalorder %s48, %s51
      %p60 = scmp.eq.s32.totalorder %s31, 1
      %p61 = por %p59, %p60
      %p62 = scmp.ne.s32.totalorder %s51, %s52
      %p63 = scmp.eq.s32.totalorder %s31, 0
      %p64 = por %p62, %p63
      %p65 = scmp.ne.s32.totalorder %s51, %s52
      %p66 = scmp.eq.s32.totalorder %s32, 1
      %p67 = por %p65, %p66
      %p69 = scmp.ne.s32.totalorder %s52, %s68
      %p70 = scmp.eq.s32.totalorder %s32, 0
      %p71 = por %p69, %p70
      %s72 = ssub.s32 %s34, %s41
      %p73 = scmp.eq.s32.totalorder %s72, 0
      %s75 = sadd.s32 %s74, 1
      %s76 = scalar_select %p73, %s74, %s75
      %p79 = pneg %p73
      %p80 = scmp.eq.s32.totalorder %s26, 1
      %p81 = por %p79, %p80
      %p82 = scmp.ne.s32.totalorder %s74, %s77
      %p83 = scmp.eq.s32.totalorder %s26, 0
      %p84 = por %p82, %p83
      %p85 = scmp.ne.s32.totalorder %s74, %s77
      %p86 = scmp.eq.s32.totalorder %s31, 1
      %p87 = por %p85, %p86
      %p88 = scmp.ne.s32.totalorder %s77, %s78
      %p89 = scmp.eq.s32.totalorder %s31, 0
      %p90 = por %p88, %p89
      %p91 = scmp.ne.s32.totalorder %s77, %s78
      %p92 = scmp.eq.s32.totalorder %s32, 1
      %p93 = por %p91, %p92
      %p95 = scmp.ne.s32.totalorder %s78, %s94
      %p96 = scmp.eq.s32.totalorder %s32, 0
      %p97 = por %p95, %p96
      %s98 = ssub.s32 %s34, %s41
      %p99 = scmp.eq.s32.totalorder %s98, 0
      %s101 = sadd.s32 %s100, 1
      %s102 = scalar_select %p99, %s100, %s101
      %p105 = pneg %p99
      %p106 = scmp.eq.s32.totalorder %s26, 1
      %p107 = por %p105, %p106
      %p108 = scmp.ne.s32.totalorder %s100, %s103
      %p109 = scmp.eq.s32.totalorder %s26, 0
      %p110 = por %p108, %p109
      %p111 = scmp.ne.s32.totalorder %s100, %s103
      %p112 = scmp.eq.s32.totalorder %s31, 1
      %p113 = por %p111, %p112
      %p114 = scmp.ne.s32.totalorder %s103, %s104
      %p115 = scmp.eq.s32.totalorder %s31, 0
      %p116 = por %p114, %p115
      %p117 = scmp.ne.s32.totalorder %s103, %s104
      %p118 = scmp.eq.s32.totalorder %s32, 1
      %p119 = por %p117, %p118
      %p121 = scmp.ne.s32.totalorder %s104, %s120
      %p122 = scmp.eq.s32.totalorder %s32, 0
      %p123 = por %p121, %p122
      %s125 = sadd.s32 %s124, 1
      %p128 = scmp.eq.s32.totalorder %s26, 1
      %p129 = scmp.ne.s32.totalorder %s124, %s126
      %p130 = scmp.eq.s32.totalorder %s26, 0
      %p131 = por %p129, %p130
      %p132 = scmp.ne.s32.totalorder %s124, %s126
      %p133 = scmp.eq.s32.totalorder %s31, 1
      %p134 = por %p132, %p133
      %p135 = scmp.ne.s32.totalorder %s126, %s127
      %p136 = scmp.eq.s32.totalorder %s31, 0
      %p137 = por %p135, %p136
      %p138 = scmp.ne.s32.totalorder %s126, %s127
      %p139 = scmp.eq.s32.totalorder %s32, 1
      %p140 = por %p138, %p139
      %p142 = scmp.ne.s32.totalorder %s127, %s141
      %p143 = scmp.eq.s32.totalorder %s32, 0
      %p144 = por %p142, %p143
      %s145 = ssub.s32 %s34, %s41
      %p146 = scmp.eq.s32.totalorder %s145, 0
      %s148 = sadd.s32 %s147, 1
      %s149 = scalar_select %p146, %s147, %s148
      %p152 = pneg %p146
      %p153 = scmp.eq.s32.totalorder %s26, 1
      %p154 = por %p152, %p153
      %p155 = scmp.ne.s32.totalorder %s147, %s150
      %p156 = scmp.eq.s32.totalorder %s26, 0
      %p157 = por %p155, %p156
      %p158 = scmp.ne.s32.totalorder %s147, %s150
      %p159 = scmp.eq.s32.totalorder %s31, 1
      %p160 = por %p158, %p159
      %p161 = scmp.ne.s32.totalorder %s150, %s151
      %p162 = scmp.eq.s32.totalorder %s31, 0
      %p163 = por %p161, %p162
      %p164 = scmp.ne.s32.totalorder %s150, %s151
      %p165 = scmp.eq.s32.totalorder %s32, 1
      %p166 = por %p164, %p165
      %p168 = scmp.ne.s32.totalorder %s151, %s167
      %p169 = scmp.eq.s32.totalorder %s32, 0
      %p170 = por %p168, %p169
      %s172 = sadd.s32 %s171, 1
      %p175 = scmp.eq.s32.totalorder %s26, 1
      %p176 = scmp.ne.s32.totalorder %s171, %s173
      %p177 = scmp.eq.s32.totalorder %s26, 0
      %p178 = por %p176, %p177
      %p179 = scmp.ne.s32.totalorder %s171, %s173
      %p180 = scmp.eq.s32.totalorder %s31, 1
      %p181 = por %p179, %p180
      %p182 = scmp.ne.s32.totalorder %s173, %s174
      %p183 = scmp.eq.s32.totalorder %s31, 0
      %p184 = por %p182, %p183
      %p185 = scmp.ne.s32.totalorder %s173, %s174
      %p186 = scmp.eq.s32.totalorder %s32, 1
      %p187 = por %p185, %p186
      %p189 = scmp.ne.s32.totalorder %s174, %s188
      %p190 = scmp.eq.s32.totalorder %s32, 0
      %p191 = por %p189, %p190
      %s193 = sadd.s32 %s192, 1
      %p196 = scmp.eq.s32.totalorder %s26, 1
      %p197 = scmp.ne.s32.totalorder %s192, %s194
      %p198 = scmp.eq.s32.totalorder %s26, 0
      %p199 = por %p197, %p198
      %p200 = scmp.ne.s32.totalorder %s192, %s194
      %p201 = scmp.eq.s32.totalorder %s31, 1
      %p202 = por %p200, %p201
      %p203 = scmp.ne.s32.totalorder %s194, %s195
      %p204 = scmp.eq.s32.totalorder %s31, 0
      %p205 = por %p203, %p204
      %p206 = scmp.ne.s32.totalorder %s194, %s195
      %p207 = scmp.eq.s32.totalorder %s32, 1
      %p208 = por %p206, %p207
      %p210 = scmp.ne.s32.totalorder %s195, %s209
      %p211 = scmp.eq.s32.totalorder %s32, 0
      %p212 = por %p210, %p211
      %s214 = sadd.s32 %s213, 1
      %p217 = scmp.eq.s32.totalorder %s26, 1
      %p218 = scmp.ne.s32.totalorder %s213, %s215
      %p219 = scmp.eq.s32.totalorder %s26, 0
      %p220 = por %p218, %p219
      %p221 = scmp.ne.s32.totalorder %s213, %s215
      %p222 = scmp.eq.s32.totalorder %s31, 1
      %p223 = por %p221, %p222
      %p224 = scmp.ne.s32.totalorder %s215, %s216
      %p225 = scmp.eq.s32.totalorder %s31, 0
      %p226 = por %p224, %p225
      %p227 = scmp.ne.s32.totalorder %s215, %s216
      %p228 = scmp.eq.s32.totalorder %s32, 1
      %p229 = por %p227, %p228
      %p231 = scmp.ne.s32.totalorder %s216, %s230
      %p232 = scmp.eq.s32.totalorder %s32, 0
      %p233 = por %p231, %p232
      %s235 = sadd.s32 %s234, 1
      %p238 = scmp.eq.s32.totalorder %s26, 1
      %p239 = scmp.ne.s32.totalorder %s234, %s236
      %p240 = scmp.eq.s32.totalorder %s26, 0
      %p241 = por %p239, %p240
      %p242 = scmp.ne.s32.totalorder %s234, %s236
      %p243 = scmp.eq.s32.totalorder %s31, 1
      %p244 = por %p242, %p243
      %p245 = scmp.ne.s32.totalorder %s236, %s237
      %p246 = scmp.eq.s32.totalorder %s31, 0
      %p247 = por %p245, %p246
      %p248 = scmp.ne.s32.totalorder %s236, %s237
      %p249 = scmp.eq.s32.totalorder %s32, 1
      %p250 = por %p248, %p249
      %p252 = scmp.ne.s32.totalorder %s237, %s251
      %p253 = scmp.eq.s32.totalorder %s32, 0
      %p254 = por %p252, %p253
      %s256 = sadd.s32 %s255, 1
      %p259 = scmp.eq.s32.totalorder %s26, 1
      %p260 = scmp.ne.s32.totalorder %s255, %s257
      %p261 = scmp.eq.s32.totalorder %s26, 0
      %p262 = por %p260, %p261
      %p263 = scmp.ne.s32.totalorder %s255, %s257
      %p264 = scmp.eq.s32.totalorder %s31, 1
      %p265 = por %p263, %p264
      %p266 = scmp.ne.s32.totalorder %s257, %s258
      %p267 = scmp.eq.s32.totalorder %s31, 0
      %p268 = por %p266, %p267
      %p269 = scmp.ne.s32.totalorder %s257, %s258
      %p270 = scmp.eq.s32.totalorder %s32, 1
      %p271 = por %p269, %p270
      %p273 = scmp.ne.s32.totalorder %s258, %s272
      %p274 = scmp.eq.s32.totalorder %s32, 0
      %p275 = por %p273, %p274
      %s277 = sadd.s32 %s276, 1
      %p280 = scmp.eq.s32.totalorder %s26, 1
      %p281 = scmp.ne.s32.totalorder %s276, %s278
      %p282 = scmp.eq.s32.totalorder %s26, 0
      %p283 = por %p281, %p282
      %p284 = scmp.ne.s32.totalorder %s276, %s278
      %p285 = scmp.eq.s32.totalorder %s31, 1
      %p286 = por %p284, %p285
      %p287 = scmp.ne.s32.totalorder %s278, %s279
      %p288 = scmp.eq.s32.totalorder %s31, 0
      %p289 = por %p287, %p288
      %p290 = scmp.ne.s32.totalorder %s278, %s279
      %p291 = scmp.eq.s32.totalorder %s32, 1
      %p292 = por %p290, %p291
      %p294 = scmp.ne.s32.totalorder %s279, %s293
      %p295 = scmp.eq.s32.totalorder %s32, 0
      %p296 = por %p294, %p295
      %s298 = sadd.s32 %s297, 1
      %p301 = scmp.eq.s32.totalorder %s26, 1
      %p302 = scmp.ne.s32.totalorder %s297, %s299
      %p303 = scmp.eq.s32.totalorder %s26, 0
      %p304 = por %p302, %p303
      %p305 = scmp.ne.s32.totalorder %s297, %s299
      %p306 = scmp.eq.s32.totalorder %s31, 1
      %p307 = por %p305, %p306
      %p308 = scmp.ne.s32.totalorder %s299, %s300
      %p309 = scmp.eq.s32.totalorder %s31, 0
      %p310 = por %p308, %p309
      %p311 = scmp.ne.s32.totalorder %s299, %s300
      %p312 = scmp.eq.s32.totalorder %s32, 1
      %p313 = por %p311, %p312
      %p315 = scmp.ne.s32.totalorder %s300, %s314
      %p316 = scmp.eq.s32.totalorder %s32, 0
      %p317 = por %p315, %p316
      %s319 = sadd.s32 %s318, 1
      %p322 = scmp.eq.s32.totalorder %s26, 1
      %p323 = scmp.ne.s32.totalorder %s318, %s320
      %p324 = scmp.eq.s32.totalorder %s26, 0
      %p325 = por %p323, %p324
      %p326 = scmp.ne.s32.totalorder %s318, %s320
      %p327 = scmp.eq.s32.totalorder %s31, 1
      %p328 = por %p326, %p327
      %p329 = scmp.ne.s32.totalorder %s320, %s321
      %p330 = scmp.eq.s32.totalorder %s31, 0
      %p331 = por %p329, %p330
      %p332 = scmp.ne.s32.totalorder %s320, %s321
      %p333 = scmp.eq.s32.totalorder %s32, 1
      %p334 = por %p332, %p333
      %p336 = scmp.ne.s32.totalorder %s321, %s335
      %p337 = scmp.eq.s32.totalorder %s32, 0
      %p338 = por %p336, %p337
      %s340 = sadd.s32 %s339, 1
      %p343 = scmp.eq.s32.totalorder %s26, 1
      %p344 = scmp.ne.s32.totalorder %s339, %s341
      %p345 = scmp.eq.s32.totalorder %s26, 0
      %p346 = por %p344, %p345
      %p347 = scmp.ne.s32.totalorder %s339, %s341
      %p348 = scmp.eq.s32.totalorder %s31, 1
      %p349 = por %p347, %p348
      %p350 = scmp.ne.s32.totalorder %s341, %s342
      %p351 = scmp.eq.s32.totalorder %s31, 0
      %p352 = por %p350, %p351
      %p353 = scmp.ne.s32.totalorder %s341, %s342
      %p354 = scmp.eq.s32.totalorder %s32, 1
      %p355 = por %p353, %p354
      %p357 = scmp.ne.s32.totalorder %s342, %s356
      %p358 = scmp.eq.s32.totalorder %s32, 0
      %p359 = por %p357, %p358
      %s361 = sadd.s32 %s360, 1
      %p364 = scmp.eq.s32.totalorder %s26, 1
      %p365 = scmp.ne.s32.totalorder %s360, %s362
      %p366 = scmp.eq.s32.totalorder %s26, 0
      %p367 = por %p365, %p366
      %p368 = scmp.ne.s32.totalorder %s360, %s362
      %p369 = scmp.eq.s32.totalorder %s31, 1
      %p370 = por %p368, %p369
      %p371 = scmp.ne.s32.totalorder %s362, %s363
      %p372 = scmp.eq.s32.totalorder %s31, 0
      %p373 = por %p371, %p372
      %p374 = scmp.ne.s32.totalorder %s362, %s363
      %p375 = scmp.eq.s32.totalorder %s32, 1
      %p376 = por %p374, %p375
      %p378 = scmp.ne.s32.totalorder %s363, %s377
      %p379 = scmp.eq.s32.totalorder %s32, 0
      %p380 = por %p378, %p379
      %s381 = smul.u32 %s33, %s34
      %s382 = smul.u32 %s45, %s41
      %s383 = ssub.s32 %s381, %s382
      %p384 = scmp.eq.s32.totalorder %s383, 0
      %s386 = sadd.s32 %s385, 1
      %s387 = scalar_select %p384, %s385, %s386
      %p390 = pneg %p384
      %p391 = scmp.eq.s32.totalorder %s26, 1
      %p392 = por %p390, %p391
      %p393 = scmp.ne.s32.totalorder %s385, %s388
      %p394 = scmp.eq.s32.totalorder %s26, 0
      %p395 = por %p393, %p394
      %p396 = scmp.ne.s32.totalorder %s385, %s388
      %p397 = scmp.eq.s32.totalorder %s31, 1
      %p398 = por %p396, %p397
      %p399 = scmp.ne.s32.totalorder %s388, %s389
      %p400 = scmp.eq.s32.totalorder %s31, 0
      %p401 = por %p399, %p400
      %p402 = scmp.ne.s32.totalorder %s388, %s389
      %p403 = scmp.eq.s32.totalorder %s32, 1
      %p404 = por %p402, %p403
      %p406 = scmp.ne.s32.totalorder %s389, %s405
      %p407 = scmp.eq.s32.totalorder %s32, 0
      %p408 = por %p406, %p407
      %p409 = scmp.le.s32.totalorder 1, %s26
      %p410 = scmp.lt.s32.totalorder %s26, 3
      %p411 = pnand %p409, %p410
      %p412 = pneg %p411
      // Predicated region
      $region9: #{tpu_custom_call.1} parent=5 // pred_check
        _
      $region10: #{tpu_custom_call.1} parent=5 // pred_check_branch
        %414 = sbr.rel (%p411) target = $region12
      $region11: #{tpu_custom_call.1} parent=5 // pred_region
        %s415 = ssub.s32 %s26, 1
        // Predicated region
        $region13: #{tpu_custom_call.1} parent=11 // pred_check
          %p416 = pneg %p64
        $region14: #{tpu_custom_call.1} parent=11 // pred_check_branch
          %418 = sbr.rel (%p416) target = $region16
        $region15: #{tpu_custom_call.1} parent=11 // pred_region
          %s419 = smul.u32 4, %s36
          %p420 = scmp.lt.s32.totalorder %s419, 3
          %s421 = scalar_select %p420, %s419, 3
          %s422 = smul.addr %s421, 8
          %s423 = scalar_lea.vmem %s0, %s422
          %s424 = smul.u32 4, %s36
        $region16: #{tpu_custom_call.1} parent=11 // pred_fallthru
          _
        // Predicated region
        $region17: #{tpu_custom_call.1} parent=11 // pred_check
          %p425 = pneg %p90
        $region18: #{tpu_custom_call.1} parent=11 // pred_check_branch
          %427 = sbr.rel (%p425) target = $region20
        $region19: #{tpu_custom_call.1} parent=11 // pred_region
          %s428 = smul.u32 4, %s36
          %p429 = scmp.lt.s32.totalorder %s428, 3
          %s430 = scalar_select %p429, %s428, 3
          %s431 = smul.addr %s430, 8
          %s432 = scalar_lea.vmem %s1, %s431
          %s433 = smul.u32 4, %s36
        $region20: #{tpu_custom_call.1} parent=11 // pred_fallthru
          _
        // Predicated region
        $region21: #{tpu_custom_call.1} parent=11 // pred_check
          %p434 = pneg %p116
        $region22: #{tpu_custom_call.1} parent=11 // pred_check_branch
          %436 = sbr.rel (%p434) target = $region24
        $region23: #{tpu_custom_call.1} parent=11 // pred_region
          %p437 = scmp.lt.s32.totalorder %s36, 0
          %s438 = scalar_select %p437, %s36, 0
          %s439 = scalar_lea.vmem %s2, %s438
        $region24: #{tpu_custom_call.1} parent=11 // pred_fallthru
          _
        // Predicated region
        $region25: #{tpu_custom_call.1} parent=11 // pred_check
          %p440 = pneg %p137
        $region26: #{tpu_custom_call.1} parent=11 // pred_check_branch
          %442 = sbr.rel (%p440) target = $region28
        $region27: #{tpu_custom_call.1} parent=11 // pred_region
          _
        $region28: #{tpu_custom_call.1} parent=11 // pred_fallthru
          _
        // Predicated region
        $region29: #{tpu_custom_call.1} parent=11 // pred_check
          %p443 = pneg %p163
        $region30: #{tpu_custom_call.1} parent=11 // pred_check_branch
          %445 = sbr.rel (%p443) target = $region32
        $region31: #{tpu_custom_call.1} parent=11 // pred_region
          %s446 = smul.u32 4, %s36
          %p447 = scmp.lt.s32.totalorder %s446, 3
          %s448 = scalar_select %p447, %s446, 3
          %s449 = smul.addr %s448, 8
          %s450 = scalar_lea.vmem %s4, %s449
          %s451 = smul.u32 4, %s36
        $region32: #{tpu_custom_call.1} parent=11 // pred_fallthru
          _
        // Predicated region
        $region33: #{tpu_custom_call.1} parent=11 // pred_check
          %p452 = pneg %p184
        $region34: #{tpu_custom_call.1} parent=11 // pred_check_branch
          %454 = sbr.rel (%p452) target = $region36
        $region35: #{tpu_custom_call.1} parent=11 // pred_region
          _
        $region36: #{tpu_custom_call.1} parent=11 // pred_fallthru
          _
        // Predicated region
        $region37: #{tpu_custom_call.1} parent=11 // pred_check
          %p455 = pneg %p205
        $region38: #{tpu_custom_call.1} parent=11 // pred_check_branch
          %457 = sbr.rel (%p455) target = $region40
        $region39: #{tpu_custom_call.1} parent=11 // pred_region
          _
        $region40: #{tpu_custom_call.1} parent=11 // pred_fallthru
          _
        // Predicated region
        $region41: #{tpu_custom_call.1} parent=11 // pred_check
          %p458 = pneg %p226
        $region42: #{tpu_custom_call.1} parent=11 // pred_check_branch
          %460 = sbr.rel (%p458) target = $region44
        $region43: #{tpu_custom_call.1} parent=11 // pred_region
          _
        $region44: #{tpu_custom_call.1} parent=11 // pred_fallthru
          _
        // Predicated region
        $region45: #{tpu_custom_call.1} parent=11 // pred_check
          %p461 = pneg %p247
        $region46: #{tpu_custom_call.1} parent=11 // pred_check_branch
          %463 = sbr.rel (%p461) target = $region48
        $region47: #{tpu_custom_call.1} parent=11 // pred_region
          _
        $region48: #{tpu_custom_call.1} parent=11 // pred_fallthru
          _
        // Predicated region
        $region49: #{tpu_custom_call.1} parent=11 // pred_check
          %p464 = pneg %p268
        $region50: #{tpu_custom_call.1} parent=11 // pred_check_branch
          %466 = sbr.rel (%p464) target = $region52
        $region51: #{tpu_custom_call.1} parent=11 // pred_region
          _
        $region52: #{tpu_custom_call.1} parent=11 // pred_fallthru
          _
        // Predicated region
        $region53: #{tpu_custom_call.1} parent=11 // pred_check
          %p467 = pneg %p289
        $region54: #{tpu_custom_call.1} parent=11 // pred_check_branch
          %469 = sbr.rel (%p467) target = $region56
        $region55: #{tpu_custom_call.1} parent=11 // pred_region
          _
        $region56: #{tpu_custom_call.1} parent=11 // pred_fallthru
          _
        // Predicated region
        $region57: #{tpu_custom_call.1} parent=11 // pred_check
          %p470 = pneg %p310
        $region58: #{tpu_custom_call.1} parent=11 // pred_check_branch
          %472 = sbr.rel (%p470) target = $region60
        $region59: #{tpu_custom_call.1} parent=11 // pred_region
          _
        $region60: #{tpu_custom_call.1} parent=11 // pred_fallthru
          _
        // Predicated region
        $region61: #{tpu_custom_call.1} parent=11 // pred_check
          %p473 = pneg %p331
        $region62: #{tpu_custom_call.1} parent=11 // pred_check_branch
          %475 = sbr.rel (%p473) target = $region64
        $region63: #{tpu_custom_call.1} parent=11 // pred_region
          _
        $region64: #{tpu_custom_call.1} parent=11 // pred_fallthru
          _
        // Predicated region
        $region65: #{tpu_custom_call.1} parent=11 // pred_check
          %p476 = pneg %p352
        $region66: #{tpu_custom_call.1} parent=11 // pred_check_branch
          %478 = sbr.rel (%p476) target = $region68
        $region67: #{tpu_custom_call.1} parent=11 // pred_region
          _
        $region68: #{tpu_custom_call.1} parent=11 // pred_fallthru
          _
      $region12: #{tpu_custom_call.1} parent=5 // pred_fallthru
        _
      %p479 = scmp.lt.s32.totalorder %s26, 2
      // Predicated region
      $region69: #{tpu_custom_call.1} parent=5 // pred_check
        %p480 = pneg %p479
      $region70: #{tpu_custom_call.1} parent=5 // pred_check_branch
        %482 = sbr.rel (%p480) target = $region72
      $region71: #{tpu_custom_call.1} parent=5 // pred_region
        _
      $region72: #{tpu_custom_call.1} parent=5 // pred_fallthru
        _
      %p483 = scmp.le.s32.totalorder 1, %s26
      %p484 = scmp.lt.s32.totalorder %s26, 3
      %p485 = pnand %p483, %p484
      %p486 = pneg %p485
      // Predicated region
      $region73: #{tpu_custom_call.1} parent=5 // pred_check
        _
      $region74: #{tpu_custom_call.1} parent=5 // pred_check_branch
        %488 = sbr.rel (%p485) target = $region76
      $region75: #{tpu_custom_call.1} parent=5 // pred_region
        %s489 = ssub.s32 %s26, 1
        %s490 = smul.u32 4, %s36
        %p491 = scmp.lt.s32.totalorder %s490, 3
        %s492 = scalar_select %p491, %s490, 3
        %s493 = smul.addr %s492, 8
        %s494 = scalar_lea.vmem %s0, %s493
        %p495 = pneg %p64
        %p496 = pneg %p61
        %s497 = smul.u32 4, %s36
        %p498 = scmp.lt.s32.totalorder %s497, 3
        %s499 = scalar_select %p498, %s497, 3
        %s500 = smul.addr %s499, 8
        %s501 = scalar_lea.vmem %s1, %s500
        %p502 = pneg %p90
        %p503 = pneg %p87
        %p504 = scmp.lt.s32.totalorder %s36, 0
        %s505 = scalar_select %p504, %s36, 0
        %s506 = scalar_lea.vmem %s2, %s505
        %p507 = pneg %p116
        %p508 = pneg %p113
        %p509 = pneg %p137
        %p510 = pneg %p134
        %s511 = smul.u32 4, %s36
        %p512 = scmp.lt.s32.totalorder %s511, 3
        %s513 = scalar_select %p512, %s511, 3
        %s514 = smul.addr %s513, 8
        %s515 = scalar_lea.vmem %s4, %s514
        %p516 = pneg %p163
        %p517 = pneg %p160
        %p518 = pneg %p184
        %p519 = pneg %p181
        %p520 = pneg %p205
        %p521 = pneg %p202
        %p522 = pneg %p226
        %p523 = pneg %p223
        %p524 = pneg %p247
        %p525 = pneg %p244
        %p526 = pneg %p268
        %p527 = pneg %p265
        %p528 = pneg %p289
        %p529 = pneg %p286
        %p530 = pneg %p310
        %p531 = pneg %p307
        %p532 = pneg %p331
        %p533 = pneg %p328
        %p534 = pneg %p352
        %p535 = pneg %p349
        %p536 = pneg %p373
        %p537 = pneg %p370
        %p538 = pneg %p401
        %p539 = pneg %p398
        %s540 = sand.u32 %s388, 1
        %s541 = scalar_lea.sflag [#allocation8], %s540
        %s542 = sand.u32 %s388, 1
        %s543 = smul.addr %s542, 32
        %s544 = scalar_lea.vmem [#allocation7], %s543
        %s545 = smul.u32 4, %s36
        %p546 = scmp.lt.s32.totalorder %s545, 3
        %s547 = scalar_select %p546, %s545, 3
        %s548 = smul.addr %s547, 8
        %s549 = scalar_lea.vmem %s0, %s548
        %s550 = smul.u32 4, %s36
        %s551 = smul.u32 4, %s36
        %p552 = scmp.lt.s32.totalorder %s551, 3
        %s553 = scalar_select %p552, %s551, 3
        %s554 = smul.addr %s553, 8
        %s555 = scalar_lea.vmem %s1, %s554
        %s556 = smul.u32 4, %s36
        %p557 = scmp.lt.s32.totalorder %s36, 0
        %s558 = scalar_select %p557, %s36, 0
        %s559 = scalar_lea.vmem %s2, %s558
        %s560 = smul.u32 4, %s36
        %p561 = scmp.lt.s32.totalorder %s560, 3
        %s562 = scalar_select %p561, %s560, 3
        %s563 = smul.addr %s562, 8
        %s564 = scalar_lea.vmem %s4, %s563
        %s565 = smul.u32 4, %s36
        %s566 = smul.u32 %s35, %s36
        %s567 = smul.u32 4, %s566
        %v569 = vld [vmem:[%s549] sm:$0xff]
        %v570 = vld [vmem:[%s549 + $0x8] sm:$0xff]
        %v571 = vld [vmem:[%s549 + $0x10] sm:$0xff]
        %v572 = vld [vmem:[%s549 + $0x18] sm:$0xff]
        %v573 = vld [vmem:[%s555] sm:$0xff]
        %v574 = vld [vmem:[%s555 + $0x8] sm:$0xff]
        %v575 = vld [vmem:[%s555 + $0x10] sm:$0xff]
        %v576 = vld [vmem:[%s555 + $0x18] sm:$0xff]
        %v577 = vld [vmem:[%s559] sm:$0x1]
        %v578 = vld [vmem:[%s564] sm:$0xff]
        %v579 = vld [vmem:[%s564 + $0x8] sm:$0xff]
        %v580 = vld [vmem:[%s564 + $0x10] sm:$0xff]
        %v581 = vld [vmem:[%s564 + $0x18] sm:$0xff]
        %v582 = vpack.c.bf16 %v579, %v578
        %v583 = vpack.c.bf16 %v581, %v580
        %v584 = vlaneseq
        %v585 = vand.u32 %v584, 127
        %586 = vset.pattern.permute.xlu0 0
        %587 = vperm.xlu0 %586, %v569
        %v588 = vpop.permute.xlu0 %587
        %589 = vset.pattern.permute.xlu0 0
        %590 = vperm.xlu0 %589, %v570
        %v591 = vpop.permute.xlu0 %590
        %592 = vset.pattern.permute.xlu0 0
        %593 = vperm.xlu0 %592, %v571
        %v594 = vpop.permute.xlu0 %593
        %595 = vset.pattern.permute.xlu0 0
        %596 = vperm.xlu0 %595, %v572
        %v597 = vpop.permute.xlu0 %596
        %vm598 = vcmp.eq.s32.totalorder %v585, %v588
        %vm599 = vcmp.eq.s32.totalorder %v585, %v591
        %vm600 = vcmp.eq.s32.totalorder %v585, %v594
        %vm601 = vcmp.eq.s32.totalorder %v585, %v597
        %v602 = vsel %vm598, 1, 0
        %v603 = vsel %vm599, 1, 0
        %v604 = vsel %vm600, 1, 0
        %v605 = vsel %vm601, 1, 0
        %v606 = vcvt.s32.f32 %v602
        %v607 = vcvt.s32.f32 %v603
        %v608 = vcvt.s32.f32 %v604
        %v609 = vcvt.s32.f32 %v605
        %v610 = vpack.c.bf16 %v607, %v606
        %v611 = vpack.c.bf16 %v609, %v608
        %612 = vset.pattern.permute.xlu0 0
        %613 = vperm.xlu0 %612, %v573
        %v614 = vpop.permute.xlu0 %613
        %615 = vset.pattern.permute.xlu0 0
        %616 = vperm.xlu0 %615, %v574
        %v617 = vpop.permute.xlu0 %616
        %618 = vset.pattern.permute.xlu0 0
        %619 = vperm.xlu0 %618, %v575
        %v620 = vpop.permute.xlu0 %619
        %621 = vset.pattern.permute.xlu0 0
        %622 = vperm.xlu0 %621, %v576
        %v623 = vpop.permute.xlu0 %622
        %vm624 = vcmp.eq.s32.totalorder %v585, %v614
        %vm625 = vcmp.eq.s32.totalorder %v585, %v617
        %vm626 = vcmp.eq.s32.totalorder %v585, %v620
        %vm627 = vcmp.eq.s32.totalorder %v585, %v623
        %v628 = vsel %vm624, 1, 0
        %v629 = vsel %vm625, 1, 0
        %v630 = vsel %vm626, 1, 0
        %v631 = vsel %vm627, 1, 0
        %v632 = vcvt.s32.f32 %v628
        %v633 = vcvt.s32.f32 %v629
        %v634 = vcvt.s32.f32 %v630
        %v635 = vcvt.s32.f32 %v631
        %v636 = vpack.c.bf16 %v633, %v632
        %v637 = vpack.c.bf16 %v635, %v634
        %p638 = scmp.eq.s32.totalorder %s35, 0
        // Predicated region
        $region77: #{tpu_custom_call.1} parent=75 // pred_check
          %p639 = pneg %p638
        $region78: #{tpu_custom_call.1} parent=75 // pred_check_branch
          %641 = sbr.rel (%p639) target = $region80
        $region79: #{tpu_custom_call.1} parent=75 // pred_region
          %p642 = scmp.eq.s32.totalorder %s36, 0
          // Predicated region
          $region81: #{tpu_custom_call.1} parent=79 // pred_check
            %p643 = pneg %p642
          $region82: #{tpu_custom_call.1} parent=79 // pred_check_branch
            %645 = sbr.rel (%p643) target = $region84
          $region83: #{tpu_custom_call.1} parent=79 // pred_region
            %vm646 = vcmask 261120
            %647 = vst.msk [vmem:[#allocation2] sm:$0xff] %vm646, 0.0
            %vm648 = vcmask 0
            %649 = vst.msk [vmem:[#allocation4] sm:$0x1] %vm648, 0.0
          $region84: #{tpu_custom_call.1} parent=79 // pred_fallthru
            _
          %v650 = vld [vmem:[%s3] sm:$0xff]
          %v651 = vpack.c.bf16 %v650, %v650
          %v652 = vld [vmem:[%s13] sm:$0x1]
          %v653 = vld [vmem:[%s13 + $0x1] sm:$0x1]
          %v654 = vld [vmem:[%s13 + $0x2] sm:$0x1]
          %vm655 = vcmask 64512
          %v657 = vsel %vm655, %v610, 0
          %v660 = vsel %vm655, %v611, 0
          %vm662 = vcmask 1043456
          %v664 = vsel %vm662, %v651, 0
          %666 = vmatprep.subr.bf16.mxu0 0
          %667 = vmatpush1.bf16.msra.mxu0 0
          %668 = vmatprep.subr.bf16.mxu0 0
          %669 = vmatpush1.bf16.msra.mxu0 0
          %670 = vmatprep.subr.bf16.mxu0 0
          %671 = vmatpush1.bf16.msra.mxu0 0
          %672 = vmatprep.subr.bf16.mxu0 0
          %673 = vmatpush1.bf16.msra.mxu0 0
          %674 = vmatprep.subr.bf16.mxu0 0
          %675 = vmatpush1.bf16.msra.mxu0 0
          %676 = vmatprep.subr.bf16.mxu0 0
          %677 = vmatpush1.bf16.msra.mxu0 0
          %678 = vmatprep.subr.bf16.mxu0 0
          %679 = vmatpush1.bf16.msra.mxu0 0
          %680 = vmatprep.subr.bf16.mxu0 0
          %681 = vmatpush1.bf16.msra.mxu0 %v664
          %682 = vmatprep.subr.bf16.mxu0 0
          %683 = vmatpush2.bf16.msra.mxu0 0
          %684 = vmatprep.subr.bf16.mxu0 0
          %685 = vmatpush2.bf16.msra.mxu0 0
          %686 = vmatprep.subr.bf16.mxu0 0
          %687 = vmatpush2.bf16.msra.mxu0 0
          %688 = vmatprep.subr.bf16.mxu0 0
          %689 = vmatpush2.bf16.msra.mxu0 0
          %690 = vmatprep.subr.bf16.mxu0 0
          %691 = vmatpush2.bf16.msra.mxu0 0
          %692 = vmatprep.subr.bf16.mxu0 0
          %693 = vmatpush2.bf16.msra.mxu0 0
          %694 = vmatprep.subr.bf16.mxu0 0
          %695 = vmatpush2.bf16.msra.mxu0 0
          %696 = vmatprep.subr.bf16.mxu0 0
          %697 = vmatpush2.bf16.msra.mxu0 0
          %698 = vmatprep.mubr.bf16.mxu0 0
          %699 = vmatmul.mubr.bf16.gmra.mxu0 %v657
          %v700 = vpop.f32.mrf.mxu0
          %v701 = vadd.f32 0.0, %v700
          %v702 = vpop.f32.mrf.mxu0
          %v703 = vpop.f32.mrf.mxu0
          %v704 = vadd.f32 0.0, %v703
          %v705 = vpop.f32.mrf.mxu0
          %706 = vmatprep.mubr.bf16.mxu0 0
          %707 = vmatmul.mubr.bf16.gmra.mxu0 %v660
          %v708 = vpop.f32.mrf.mxu0
          %v709 = vadd.f32 0.0, %v708
          %v710 = vpop.f32.mrf.mxu0
          %v711 = vpop.f32.mrf.mxu0
          %v712 = vadd.f32 0.0, %v711
          %v713 = vpop.f32.mrf.mxu0
          %714 = vdwg.mxu0
          %v715 = vpack.c.bf16 %v704, %v701
          %v716 = vpack.c.bf16 %v712, %v709
          %v718 = vsel %vm655, %v636, 0
          %v721 = vsel %vm655, %v637, 0
          %723 = vmatprep.subr.bf16.mxu0 0
          %724 = vmatpush1.bf16.msra.mxu0 0
          %725 = vmatprep.subr.bf16.mxu0 0
          %726 = vmatpush1.bf16.msra.mxu0 0
          %727 = vmatprep.subr.bf16.mxu0 0
          %728 = vmatpush1.bf16.msra.mxu0 0
          %729 = vmatprep.subr.bf16.mxu0 0
          %730 = vmatpush1.bf16.msra.mxu0 0
          %731 = vmatprep.subr.bf16.mxu0 0
          %732 = vmatpush1.bf16.msra.mxu0 0
          %733 = vmatprep.subr.bf16.mxu0 0
          %734 = vmatpush1.bf16.msra.mxu0 0
          %735 = vmatprep.subr.bf16.mxu0 0
          %736 = vmatpush1.bf16.msra.mxu0 0
          %737 = vmatprep.subr.bf16.mxu0 0
          %738 = vmatpush1.bf16.msra.mxu0 %v664
          %739 = vmatprep.subr.bf16.mxu0 0
          %740 = vmatpush2.bf16.msra.mxu0 0
          %741 = vmatprep.subr.bf16.mxu0 0
          %742 = vmatpush2.bf16.msra.mxu0 0
          %743 = vmatprep.subr.bf16.mxu0 0
          %744 = vmatpush2.bf16.msra.mxu0 0
          %745 = vmatprep.subr.bf16.mxu0 0
          %746 = vmatpush2.bf16.msra.mxu0 0
          %747 = vmatprep.subr.bf16.mxu0 0
          %748 = vmatpush2.bf16.msra.mxu0 0
          %749 = vmatprep.subr.bf16.mxu0 0
          %750 = vmatpush2.bf16.msra.mxu0 0
          %751 = vmatprep.subr.bf16.mxu0 0
          %752 = vmatpush2.bf16.msra.mxu0 0
          %753 = vmatprep.subr.bf16.mxu0 0
          %754 = vmatpush2.bf16.msra.mxu0 0
          %755 = vmatprep.mubr.bf16.mxu0 0
          %756 = vmatmul.mubr.bf16.gmra.mxu0 %v718
          %v757 = vpop.f32.mrf.mxu0
          %v758 = vadd.f32 0.0, %v757
          %v759 = vpop.f32.mrf.mxu0
          %v760 = vpop.f32.mrf.mxu0
          %v761 = vadd.f32 0.0, %v760
          %v762 = vpop.f32.mrf.mxu0
          %763 = vmatprep.mubr.bf16.mxu0 0
          %764 = vmatmul.mubr.bf16.gmra.mxu0 %v721
          %v765 = vpop.f32.mrf.mxu0
          %v766 = vadd.f32 0.0, %v765
          %v767 = vpop.f32.mrf.mxu0
          %v768 = vpop.f32.mrf.mxu0
          %v769 = vadd.f32 0.0, %v768
          %v770 = vpop.f32.mrf.mxu0
          %771 = vdwg.mxu0
          %v772 = vpack.c.bf16 %v761, %v758
          %v773 = vpack.c.bf16 %v769, %v766
          %776 = vrot.lane.b32.xlu0 %v582, 32
          %v777 = vpop.permute.xlu0 %776
          %778 = vrot.lane.b32.xlu0 %v583, 32
          %v779 = vpop.permute.xlu0 %778
          %782 = vrot.lane.b32.xlu0 %v772, 64
          %v783 = vpop.permute.xlu0 %782
          %784 = vrot.lane.b32.xlu0 %v773, 64
          %v785 = vpop.permute.xlu0 %784
          %vm786 = vcmask 261120
          %v789 = vsel %vm786, %v715, %v777
          %v792 = vsel %vm786, %v716, %v779
          %vm793 = vcmask 523264
          %v795 = vsel %vm793, %v789, %v783
          %v797 = vsel %vm793, %v792, %v785
          %v798 = vld [vmem:[%s5] sm:$0xf]
          %v799 = vld [vmem:[%s5 + $0x4] sm:$0xf]
          %v800 = vld [vmem:[%s5 + $0x8] sm:$0xf]
          %v801 = vld [vmem:[%s5 + $0xc] sm:$0xf]
          %v802 = vld [vmem:[%s5 + $0x10] sm:$0xf]
          %v803 = vld [vmem:[%s5 + $0x14] sm:$0xf]
          %v804 = vld [vmem:[%s5 + $0x18] sm:$0xf]
          %v805 = vld [vmem:[%s5 + $0x1c] sm:$0xf]
          %v806 = vld [vmem:[%s5 + $0x20] sm:$0xf]
          %v807 = vld [vmem:[%s5 + $0x24] sm:$0xf]
          %v808 = vld [vmem:[%s5 + $0x28] sm:$0xf]
          %v809 = vld [vmem:[%s5 + $0x2c] sm:$0xf]
          %v810 = vlaneseq
          %v811 = vshrl.u32 %v810, 7
          %v812 = vsub.s32 0, %v811
          %v813 = vrot.slane %v652, %v812
          %v826 = vunpack.c.l.b16 %v798
          %v827 = vunpack.c.l.b16 %v799
          %v828 = vunpack.c.l.b16 %v800
          %v829 = vunpack.c.l.b16 %v801
          %v830 = vunpack.c.l.b16 %v802
          %v831 = vunpack.c.l.b16 %v803
          %v832 = vunpack.c.l.b16 %v804
          %v833 = vunpack.c.l.b16 %v805
          %v834 = vunpack.c.l.b16 %v806
          %v835 = vunpack.c.l.b16 %v807
          %v836 = vunpack.c.l.b16 %v808
          %v837 = vunpack.c.l.b16 %v809
          %v838 = vpack.c.b16 %v827, %v826
          %v839 = vpack.c.b16 %v829, %v828
          %v840 = vpack.c.b16 %v831, %v830
          %v841 = vpack.c.b16 %v833, %v832
          %v842 = vpack.c.b16 %v835, %v834
          %v843 = vpack.c.b16 %v837, %v836
          %vm850 = vcmask 785408
          %v851 = vsel %vm850, %v795, 0
          %v853 = vsel %vm850, %v797, 0
          %855 = vmatprep.subr.bf16.mxu0 0
          %856 = vmatpush1.bf16.msra.mxu0 0
          %857 = vmatprep.subr.bf16.mxu0 0
          %858 = vmatpush1.bf16.msra.mxu0 0
          %859 = vmatprep.subr.bf16.mxu0 0
          %860 = vmatpush1.bf16.msra.mxu0 %v843
          %861 = vmatprep.subr.bf16.mxu0 0
          %862 = vmatpush1.bf16.msra.mxu0 %v842
          %863 = vmatprep.subr.bf16.mxu0 0
          %864 = vmatpush1.bf16.msra.mxu0 %v841
          %865 = vmatprep.subr.bf16.mxu0 0
          %866 = vmatpush1.bf16.msra.mxu0 %v840
          %867 = vmatprep.subr.bf16.mxu0 0
          %868 = vmatpush1.bf16.msra.mxu0 %v839
          %869 = vmatprep.subr.bf16.mxu0 0
          %870 = vmatpush1.bf16.msra.mxu0 %v838
          %871 = vmatprep.subr.bf16.mxu0 0
          %872 = vmatpush2.bf16.msra.mxu0 0
          %873 = vmatprep.subr.bf16.mxu0 0
          %874 = vmatpush2.bf16.msra.mxu0 0
          %875 = vmatprep.subr.bf16.mxu0 0
          %876 = vmatpush2.bf16.msra.mxu0 0
          %877 = vmatprep.subr.bf16.mxu0 0
          %878 = vmatpush2.bf16.msra.mxu0 0
          %879 = vmatprep.subr.bf16.mxu0 0
          %880 = vmatpush2.bf16.msra.mxu0 0
          %881 = vmatprep.subr.bf16.mxu0 0
          %882 = vmatpush2.bf16.msra.mxu0 0
          %883 = vmatprep.subr.bf16.mxu0 0
          %884 = vmatpush2.bf16.msra.mxu0 0
          %885 = vmatprep.subr.bf16.mxu0 0
          %886 = vmatpush2.bf16.msra.mxu0 0
          %887 = vmatprep.mubr.bf16.mxu0 0
          %888 = vmatmul.mubr.bf16.gmra.mxu0 %v851
          %v889 = vpop.f32.mrf.mxu0
          %v890 = vadd.f32 %v813, %v889
          %v891 = vpop.f32.mrf.mxu0
          %v892 = vpop.f32.mrf.mxu0
          %v893 = vadd.f32 %v813, %v892
          %v894 = vpop.f32.mrf.mxu0
          %895 = vmatprep.mubr.bf16.mxu0 0
          %896 = vmatmul.mubr.bf16.gmra.mxu0 %v853
          %v897 = vpop.f32.mrf.mxu0
          %v898 = vadd.f32 %v813, %v897
          %v899 = vpop.f32.mrf.mxu0
          %v900 = vpop.f32.mrf.mxu0
          %v901 = vadd.f32 %v813, %v900
          %v902 = vpop.f32.mrf.mxu0
          %903 = vdwg.mxu0
          %v904 = vmul.f32 %v890, %v890
          %v905 = vmul.f32 %v893, %v893
          %v906 = vmul.f32 %v898, %v898
          %v907 = vmul.f32 %v901, %v901
          %v908 = vmul.f32 %v890, %v904
          %v909 = vmul.f32 %v893, %v905
          %v910 = vmul.f32 %v898, %v906
          %v911 = vmul.f32 %v901, %v907
          %v912 = vmul.f32 %v908, 0.044715
          %v913 = vmul.f32 %v909, 0.044715
          %v914 = vmul.f32 %v910, 0.044715
          %v915 = vmul.f32 %v911, 0.044715
          %v916 = vadd.f32 %v890, %v912
          %v917 = vadd.f32 %v893, %v913
          %v918 = vadd.f32 %v898, %v914
          %v919 = vadd.f32 %v901, %v915
          %v920 = vmul.f32 %v916, 0.7978846
          %v921 = vmul.f32 %v917, 0.7978846
          %v922 = vmul.f32 %v918, 0.7978846
          %v923 = vmul.f32 %v919, 0.7978846
          %v924 = vtanh.pop %v920
          %v925 = vtanh.pop %v921
          %v926 = vtanh.pop %v922
          %v927 = vtanh.pop %v923
          %v928 = vadd.f32 %v924, 1.0
          %v929 = vadd.f32 %v925, 1.0
          %v930 = vadd.f32 %v926, 1.0
          %v931 = vadd.f32 %v927, 1.0
          %v932 = vmul.f32 %v928, 0.5
          %v933 = vmul.f32 %v929, 0.5
          %v934 = vmul.f32 %v930, 0.5
          %v935 = vmul.f32 %v931, 0.5
          %v936 = vmul.f32 %v890, %v932
          %v937 = vmul.f32 %v893, %v933
          %v938 = vmul.f32 %v898, %v934
          %v939 = vmul.f32 %v901, %v935
          %v940 = vpack.c.bf16 %v937, %v936
          %v941 = vpack.c.bf16 %v939, %v938
          %v942 = vld [vmem:[%s6] sm:$0xf]
          %v943 = vld [vmem:[%s6 + $0x4] sm:$0xf]
          %v944 = vld [vmem:[%s6 + $0x8] sm:$0xf]
          %v945 = vld [vmem:[%s6 + $0xc] sm:$0xf]
          %v946 = vlaneseq
          %v947 = vshrl.u32 %v946, 7
          %v948 = vsub.s32 0, %v947
          %v949 = vrot.slane %v653, %v948
          %v954 = vunpack.c.l.b16 %v942
          %v955 = vunpack.c.l.b16 %v943
          %v956 = vunpack.c.l.b16 %v944
          %v957 = vunpack.c.l.b16 %v945
          %v958 = vpack.c.b16 %v955, %v954
          %v959 = vpack.c.b16 %v957, %v956
          %v963 = vsel %vm786, %v940, 0
          %v966 = vsel %vm786, %v941, 0
          %968 = vmatprep.subr.bf16.mxu0 0
          %969 = vmatpush1.bf16.msra.mxu0 0
          %970 = vmatprep.subr.bf16.mxu0 0
          %971 = vmatpush1.bf16.msra.mxu0 0
          %972 = vmatprep.subr.bf16.mxu0 0
          %973 = vmatpush1.bf16.msra.mxu0 0
          %974 = vmatprep.subr.bf16.mxu0 0
          %975 = vmatpush1.bf16.msra.mxu0 0
          %976 = vmatprep.subr.bf16.mxu0 0
          %977 = vmatpush1.bf16.msra.mxu0 0
          %978 = vmatprep.subr.bf16.mxu0 0
          %979 = vmatpush1.bf16.msra.mxu0 0
          %980 = vmatprep.subr.bf16.mxu0 0
          %981 = vmatpush1.bf16.msra.mxu0 %v959
          %982 = vmatprep.subr.bf16.mxu0 0
          %983 = vmatpush1.bf16.msra.mxu0 %v958
          %984 = vmatprep.subr.bf16.mxu0 0
          %985 = vmatpush2.bf16.msra.mxu0 0
          %986 = vmatprep.subr.bf16.mxu0 0
          %987 = vmatpush2.bf16.msra.mxu0 0
          %988 = vmatprep.subr.bf16.mxu0 0
          %989 = vmatpush2.bf16.msra.mxu0 0
          %990 = vmatprep.subr.bf16.mxu0 0
          %991 = vmatpush2.bf16.msra.mxu0 0
          %992 = vmatprep.subr.bf16.mxu0 0
          %993 = vmatpush2.bf16.msra.mxu0 0
          %994 = vmatprep.subr.bf16.mxu0 0
          %995 = vmatpush2.bf16.msra.mxu0 0
          %996 = vmatprep.subr.bf16.mxu0 0
          %997 = vmatpush2.bf16.msra.mxu0 0
          %998 = vmatprep.subr.bf16.mxu0 0
          %999 = vmatpush2.bf16.msra.mxu0 0
          %1000 = vmatprep.mubr.bf16.mxu0 0
          %1001 = vmatmul.mubr.bf16.gmra.mxu0 %v963
          %v1002 = vpop.f32.mrf.mxu0
          %v1003 = vadd.f32 %v949, %v1002
          %v1004 = vpop.f32.mrf.mxu0
          %v1005 = vpop.f32.mrf.mxu0
          %v1006 = vadd.f32 %v949, %v1005
          %v1007 = vpop.f32.mrf.mxu0
          %1008 = vmatprep.mubr.bf16.mxu0 0
          %1009 = vmatmul.mubr.bf16.gmra.mxu0 %v966
          %v1010 = vpop.f32.mrf.mxu0
          %v1011 = vadd.f32 %v949, %v1010
          %v1012 = vpop.f32.mrf.mxu0
          %v1013 = vpop.f32.mrf.mxu0
          %v1014 = vadd.f32 %v949, %v1013
          %v1015 = vpop.f32.mrf.mxu0
          %1016 = vdwg.mxu0
          %v1017 = vmul.f32 %v1003, %v1003
          %v1018 = vmul.f32 %v1006, %v1006
          %v1019 = vmul.f32 %v1011, %v1011
          %v1020 = vmul.f32 %v1014, %v1014
          %v1021 = vmul.f32 %v1003, %v1017
          %v1022 = vmul.f32 %v1006, %v1018
          %v1023 = vmul.f32 %v1011, %v1019
          %v1024 = vmul.f32 %v1014, %v1020
          %v1025 = vmul.f32 %v1021, 0.044715
          %v1026 = vmul.f32 %v1022, 0.044715
          %v1027 = vmul.f32 %v1023, 0.044715
          %v1028 = vmul.f32 %v1024, 0.044715
          %v1029 = vadd.f32 %v1003, %v1025
          %v1030 = vadd.f32 %v1006, %v1026
          %v1031 = vadd.f32 %v1011, %v1027
          %v1032 = vadd.f32 %v1014, %v1028
          %v1033 = vmul.f32 %v1029, 0.7978846
          %v1034 = vmul.f32 %v1030, 0.7978846
          %v1035 = vmul.f32 %v1031, 0.7978846
          %v1036 = vmul.f32 %v1032, 0.7978846
          %v1037 = vtanh.pop %v1033
          %v1038 = vtanh.pop %v1034
          %v1039 = vtanh.pop %v1035
          %v1040 = vtanh.pop %v1036
          %v1041 = vadd.f32 %v1037, 1.0
          %v1042 = vadd.f32 %v1038, 1.0
          %v1043 = vadd.f32 %v1039, 1.0
          %v1044 = vadd.f32 %v1040, 1.0
          %v1045 = vmul.f32 %v1041, 0.5
          %v1046 = vmul.f32 %v1042, 0.5
          %v1047 = vmul.f32 %v1043, 0.5
          %v1048 = vmul.f32 %v1044, 0.5
          %v1049 = vmul.f32 %v1003, %v1045
          %v1050 = vmul.f32 %v1006, %v1046
          %v1051 = vmul.f32 %v1011, %v1047
          %v1052 = vmul.f32 %v1014, %v1048
          %v1053 = vpack.c.bf16 %v1050, %v1049
          %v1054 = vpack.c.bf16 %v1052, %v1051
          %v1055 = vld [vmem:[%s7] sm:$0xf]
          %v1056 = vld [vmem:[%s7 + $0x4] sm:$0xf]
          %v1057 = vld [vmem:[%s7 + $0x8] sm:$0xf]
          %v1058 = vld [vmem:[%s7 + $0xc] sm:$0xf]
          %v1059 = vlaneseq
          %v1060 = vshrl.u32 %v1059, 7
          %v1061 = vsub.s32 0, %v1060
          %v1062 = vrot.slane %v654, %v1061
          %v1067 = vunpack.c.l.b16 %v1055
          %v1068 = vunpack.c.l.b16 %v1056
          %v1069 = vunpack.c.l.b16 %v1057
          %v1070 = vunpack.c.l.b16 %v1058
          %v1071 = vpack.c.b16 %v1068, %v1067
          %v1072 = vpack.c.b16 %v1070, %v1069
          %v1076 = vsel %vm786, %v1053, 0
          %v1079 = vsel %vm786, %v1054, 0
          %1081 = vmatprep.subr.bf16.mxu0 0
          %1082 = vmatpush1.bf16.msra.mxu0 0
          %1083 = vmatprep.subr.bf16.mxu0 0
          %1084 = vmatpush1.bf16.msra.mxu0 0
          %1085 = vmatprep.subr.bf16.mxu0 0
          %1086 = vmatpush1.bf16.msra.mxu0 0
          %1087 = vmatprep.subr.bf16.mxu0 0
          %1088 = vmatpush1.bf16.msra.mxu0 0
          %1089 = vmatprep.subr.bf16.mxu0 0
          %1090 = vmatpush1.bf16.msra.mxu0 0
          %1091 = vmatprep.subr.bf16.mxu0 0
          %1092 = vmatpush1.bf16.msra.mxu0 0
          %1093 = vmatprep.subr.bf16.mxu0 0
          %1094 = vmatpush1.bf16.msra.mxu0 %v1072
          %1095 = vmatprep.subr.bf16.mxu0 0
          %1096 = vmatpush1.bf16.msra.mxu0 %v1071
          %1097 = vmatprep.subr.bf16.mxu0 0
          %1098 = vmatpush2.bf16.msra.mxu0 0
          %1099 = vmatprep.subr.bf16.mxu0 0
          %1100 = vmatpush2.bf16.msra.mxu0 0
          %1101 = vmatprep.subr.bf16.mxu0 0
          %1102 = vmatpush2.bf16.msra.mxu0 0
          %1103 = vmatprep.subr.bf16.mxu0 0
          %1104 = vmatpush2.bf16.msra.mxu0 0
          %1105 = vmatprep.subr.bf16.mxu0 0
          %1106 = vmatpush2.bf16.msra.mxu0 0
          %1107 = vmatprep.subr.bf16.mxu0 0
          %1108 = vmatpush2.bf16.msra.mxu0 0
          %1109 = vmatprep.subr.bf16.mxu0 0
          %1110 = vmatpush2.bf16.msra.mxu0 0
          %1111 = vmatprep.subr.bf16.mxu0 0
          %1112 = vmatpush2.bf16.msra.mxu0 0
          %1113 = vmatprep.mubr.bf16.mxu0 0
          %1114 = vmatmul.mubr.bf16.gmra.mxu0 %v1076
          %v1115 = vpop.f32.mrf.mxu0
          %v1116 = vadd.f32 %v1062, %v1115
          %v1117 = vpop.f32.mrf.mxu0
          %v1118 = vpop.f32.mrf.mxu0
          %v1119 = vadd.f32 %v1062, %v1118
          %v1120 = vpop.f32.mrf.mxu0
          %1121 = vmatprep.mubr.bf16.mxu0 0
          %1122 = vmatmul.mubr.bf16.gmra.mxu0 %v1079
          %v1123 = vpop.f32.mrf.mxu0
          %v1124 = vadd.f32 %v1062, %v1123
          %v1125 = vpop.f32.mrf.mxu0
          %v1126 = vpop.f32.mrf.mxu0
          %v1127 = vadd.f32 %v1062, %v1126
          %v1128 = vpop.f32.mrf.mxu0
          %1129 = vdwg.mxu0
          %vm1130 = vcmp.ge.f32.partialorder %v890, 0.0
          %vm1131 = vcmp.ge.f32.partialorder %v893, 0.0
          %vm1132 = vcmp.ge.f32.partialorder %v898, 0.0
          %vm1133 = vcmp.ge.f32.partialorder %v901, 0.0
          %v1134 = vmul.f32 %v890, 0.01
          %v1135 = vmul.f32 %v893, 0.01
          %v1136 = vmul.f32 %v898, 0.01
          %v1137 = vmul.f32 %v901, 0.01
          %v1138 = vsel %vm1130, %v890, %v1134
          %v1139 = vsel %vm1131, %v893, %v1135
          %v1140 = vsel %vm1132, %v898, %v1136
          %v1141 = vsel %vm1133, %v901, %v1137
          %v1142 = vxor.u32 %v1138, 2147483648
          %v1143 = vxor.u32 %v1139, 2147483648
          %v1144 = vxor.u32 %v1140, 2147483648
          %v1145 = vxor.u32 %v1141, 2147483648
          %v1146 = vmul.f32 %v1142, 1.442695
          %v1147 = vpow.pop %v1146
          %v1148 = vmul.f32 %v1143, 1.442695
          %v1149 = vpow.pop %v1148
          %v1150 = vmul.f32 %v1144, 1.442695
          %v1151 = vpow.pop %v1150
          %v1152 = vmul.f32 %v1145, 1.442695
          %v1153 = vpow.pop %v1152
          %v1154 = vadd.f32 %v1147, 1.0
          %v1155 = vadd.f32 %v1149, 1.0
          %v1156 = vadd.f32 %v1151, 1.0
          %v1157 = vadd.f32 %v1153, 1.0
          %v1158 = vrcp.pop %v1154
          %v1159 = vmul.f32 1.0, %v1158
          %v1160 = vrcp.pop %v1155
          %v1161 = vmul.f32 1.0, %v1160
          %v1162 = vrcp.pop %v1156
          %v1163 = vmul.f32 1.0, %v1162
          %v1164 = vrcp.pop %v1157
          %v1165 = vmul.f32 1.0, %v1164
          %v1166 = vmul.f32 %v1159, 1.442695
          %v1167 = vpow.pop %v1166
          %v1168 = vmul.f32 %v1161, 1.442695
          %v1169 = vpow.pop %v1168
          %v1170 = vmul.f32 %v1163, 1.442695
          %v1171 = vpow.pop %v1170
          %v1172 = vmul.f32 %v1165, 1.442695
          %v1173 = vpow.pop %v1172
          %s1174 = smul.u32 %s36, 32
          %v1175 = vlaneseq
          %v1176 = vshrl.u32 %v1175, 7
          %v1177 = vadd.s32 %v1176, 8
          %v1178 = vadd.s32 %v1176, 16
          %v1179 = vadd.s32 %v1176, 24
          %v1180 = vstv %s1174
          %v1181 = vadd.s32 %v1180, %v1176
          %v1182 = vadd.s32 %v1180, %v1177
          %v1183 = vadd.s32 %v1180, %v1178
          %v1184 = vadd.s32 %v1180, %v1179
          %vm1185 = vcmp.lt.s32.totalorder %v1181, 32
          %vm1186 = vcmp.lt.s32.totalorder %v1182, 32
          %vm1187 = vcmp.lt.s32.totalorder %v1183, 32
          %vm1188 = vcmp.lt.s32.totalorder %v1184, 32
          %v1189 = vsel %vm1185, %v1167, 0.0
          %v1190 = vsel %vm1186, %v1169, 0.0
          %v1191 = vsel %vm1187, %v1171, 0.0
          %v1192 = vsel %vm1188, %v1173, 0.0
          %v1193 = vld [vmem:[#allocation4] sm:$0x1]
          %1198 = vrot.lane.b32.xlu0 %v1189, 96
          %v1199 = vpop.permute.xlu0 %1198
          %1200 = vrot.lane.b32.xlu0 %v1190, 96
          %v1201 = vpop.permute.xlu0 %1200
          %1202 = vrot.lane.b32.xlu0 %v1191, 96
          %v1203 = vpop.permute.xlu0 %1202
          %1204 = vrot.lane.b32.xlu0 %v1192, 96
          %v1205 = vpop.permute.xlu0 %1204
          %vm1210 = vcmask 7168
          %v1211 = vsel %vm1210, %v1199, 0.0
          %v1212 = vsel %vm1210, %v1201, 0.0
          %v1213 = vadd.f32 %v1211, %v1212
          %v1214 = vsel %vm1210, %v1203, 0.0
          %v1215 = vadd.f32 %v1213, %v1214
          %v1216 = vsel %vm1210, %v1205, 0.0
          %v1217 = vadd.f32 %v1215, %v1216
          %1218 = vadd.xlane.f32.xlu0 %v1217
          %v1219 = vpop.xlane.xlu0 %1218
          %v1220 = vrot.slane %v1219, 4
          %v1221 = vadd.f32 %v1219, %v1220
          %v1222 = vrot.slane %v1221, 2
          %v1223 = vadd.f32 %v1221, %v1222
          %v1224 = vrot.slane %v1223, 1
          %v1225 = vadd.f32 %v1223, %v1224
          %s1226 = vtos %v1225
          %v1227 = vstv %s1226
          %v1228 = vadd.f32 %v1193, %v1227
          %vm1229 = vcmask 0
          %1230 = vst.msk [vmem:[#allocation4] sm:$0x1] %vm1229, %v1228
          %1231 = vset.pattern.permute.xlu0 32
          %1232 = vperm.xlu0 %1231, %v1189
          %v1233 = vpop.permute.xlu0 %1232
          %1235 = vset.pattern.permute.xlu0 32
          %1236 = vperm.xlu0 %1235, %v1190
          %v1237 = vpop.permute.xlu0 %1236
          %1239 = vset.pattern.permute.xlu0 32
          %1240 = vperm.xlu0 %1239, %v1191
          %v1241 = vpop.permute.xlu0 %1240
          %1243 = vset.pattern.permute.xlu0 32
          %1244 = vperm.xlu0 %1243, %v1192
          %v1245 = vpop.permute.xlu0 %1244
          %v1247 = vmul.f32 %v1116, %v1233
          %v1248 = vmul.f32 %v1119, %v1237
          %v1249 = vmul.f32 %v1124, %v1241
          %v1250 = vmul.f32 %v1127, %v1245
          %v1251 = vpack.c.bf16 %v1248, %v1247
          %v1252 = vpack.c.bf16 %v1250, %v1249
          %v1253 = vlaneseq
          %v1254 = vshrl.u32 %v1253, 7
          %v1255 = vsub.s32 0, %v1254
          %v1256 = vrot.slane %v577, %v1255
          %vm1257 = vcmp.eq.s32.totalorder %v1176, %v1256
          %v1258 = vsel %vm1257, 1, 0
          %v1259 = vcvt.s32.f32 %v1258
          %v1260 = vpack.c.bf16 %v1259, %v1259
          %v1261 = vld [vmem:[#allocation2] sm:$0xff]
          %v1263 = vsel %vm786, %v1260, 0
          %1265 = vmatprep.subr.bf16.mxu0 0
          %1266 = vmatpush1.bf16.msra.mxu0 0
          %1267 = vmatprep.subr.bf16.mxu0 0
          %1268 = vmatpush1.bf16.msra.mxu0 0
          %1269 = vmatprep.subr.bf16.mxu0 0
          %1270 = vmatpush1.bf16.msra.mxu0 0
          %1271 = vmatprep.subr.bf16.mxu0 0
          %1272 = vmatpush1.bf16.msra.mxu0 0
          %1273 = vmatprep.subr.bf16.mxu0 0
          %1274 = vmatpush1.bf16.msra.mxu0 0
          %1275 = vmatprep.subr.bf16.mxu0 0
          %1276 = vmatpush1.bf16.msra.mxu0 0
          %1277 = vmatprep.subr.bf16.mxu0 0
          %1278 = vmatpush1.bf16.msra.mxu0 %v1252
          %1279 = vmatprep.subr.bf16.mxu0 0
          %1280 = vmatpush1.bf16.msra.mxu0 %v1251
          %1281 = vmatprep.subr.bf16.mxu0 0
          %1282 = vmatpush2.bf16.msra.mxu0 0
          %1283 = vmatprep.subr.bf16.mxu0 0
          %1284 = vmatpush2.bf16.msra.mxu0 0
          %1285 = vmatprep.subr.bf16.mxu0 0
          %1286 = vmatpush2.bf16.msra.mxu0 0
          %1287 = vmatprep.subr.bf16.mxu0 0
          %1288 = vmatpush2.bf16.msra.mxu0 0
          %1289 = vmatprep.subr.bf16.mxu0 0
          %1290 = vmatpush2.bf16.msra.mxu0 0
          %1291 = vmatprep.subr.bf16.mxu0 0
          %1292 = vmatpush2.bf16.msra.mxu0 0
          %1293 = vmatprep.subr.bf16.mxu0 0
          %1294 = vmatpush2.bf16.msra.mxu0 0
          %1295 = vmatprep.subr.bf16.mxu0 0
          %1296 = vmatpush2.bf16.msra.mxu0 0
          %1297 = vmatprep.mubr.bf16.mxu0 0
          %1298 = vmatmul.mubr.bf16.gmra.mxu0 %v1263
          %v1299 = vpop.f32.mrf.mxu0
          %v1300 = vadd.f32 0.0, %v1299
          %v1301 = vpop.f32.mrf.mxu0
          %v1302 = vpop.f32.mrf.mxu0
          %v1303 = vpop.f32.mrf.mxu0
          %1304 = vdwg.mxu0
          %v1305 = vadd.f32 %v1261, %v1300
          %1306 = vst.msk [vmem:[#allocation2] sm:$0xff] %vm786, %v1305
          // Predicated region
          $region85: #{tpu_custom_call.1} parent=79 // pred_check
            %p1307 = pneg %p642
          $region86: #{tpu_custom_call.1} parent=79 // pred_check_branch
            %1309 = sbr.rel (%p1307) target = $region88
          $region87: #{tpu_custom_call.1} parent=79 // pred_region
            %v1310 = vld [vmem:[#allocation2] sm:$0xff]
            %v1311 = vld [vmem:[#allocation4] sm:$0x1]
            %v1312 = vmul.f32 %v1311, 30.0
            %v1314 = vlaneseq
            %v1315 = vshrl.u32 %v1314, 7
            %v1316 = vsub.s32 0, %v1315
            %v1317 = vrot.slane %v1312, %v1316
            %1318 = vset.pattern.permute.xlu0 0
            %1319 = vperm.xlu0 %1318, %v1317
            %v1320 = vpop.permute.xlu0 %1319
            %v1322 = vrcp.pop %v1320
            %v1323 = vmul.f32 %v1310, %v1322
            %v1324 = vld [vmem:[%s3] sm:$0xff]
            %v1325 = vadd.f32 %v1324, %v1323
            %v1326 = vld [vmem:[%s13 + $0x3] sm:$0x1]
            %v1327 = vld [vmem:[%s13 + $0x4] sm:$0x1]
            %v1328 = vsel %vm786, %v1325, 0.0
            %1329 = vadd.xlane.f32.xlu0 %v1328
            %v1330 = vpop.xlane.xlu0 %1329
            %v1331 = vrcp.pop 32.0
            %v1332 = vmul.f32 %v1330, %v1331
            %v1333 = vsub.f32 %v1325, %v1332
            %v1334 = vmul.f32 %v1333, %v1333
            %v1335 = vsel %vm786, %v1334, 0.0
            %1336 = vadd.xlane.f32.xlu0 %v1335
            %v1337 = vpop.xlane.xlu0 %1336
            %v1338 = vmul.f32 %v1337, %v1331
            %v1339 = vadd.f32 %v1338, 1e-05
            %v1340 = vrsqrt.pop %v1339
            %v1341 = vmul.f32 %v1333, %v1340
            %v1342 = vlaneseq
            %v1343 = vshrl.u32 %v1342, 7
            %v1344 = vsub.s32 0, %v1343
            %v1345 = vrot.slane %v1326, %v1344
            %v1346 = vmul.f32 %v1341, %v1345
            %v1347 = vlaneseq
            %v1348 = vshrl.u32 %v1347, 7
            %v1349 = vsub.s32 0, %v1348
            %v1350 = vrot.slane %v1327, %v1349
            %v1351 = vadd.f32 %v1346, %v1350
            %v1352 = vpack.c.bf16 %v1351, %v1351
            %v1353 = vld [vmem:[%s8] sm:$0xf]
            %v1354 = vld [vmem:[%s8 + $0x4] sm:$0xf]
            %v1355 = vld [vmem:[%s8 + $0x8] sm:$0xf]
            %v1356 = vld [vmem:[%s8 + $0xc] sm:$0xf]
            %v1357 = vld [vmem:[%s13 + $0x5] sm:$0x1]
            %v1358 = vlaneseq
            %v1359 = vshrl.u32 %v1358, 7
            %v1360 = vsub.s32 0, %v1359
            %v1361 = vrot.slane %v1357, %v1360
            %v1366 = vunpack.c.l.b16 %v1353
            %v1367 = vunpack.c.l.b16 %v1354
            %v1368 = vunpack.c.l.b16 %v1355
            %v1369 = vunpack.c.l.b16 %v1356
            %v1370 = vpack.c.b16 %v1367, %v1366
            %v1371 = vpack.c.b16 %v1369, %v1368
            %v1375 = vsel %vm786, %v1352, 0
            %1377 = vmatprep.subr.bf16.mxu0 0
            %1378 = vmatpush1.bf16.msra.mxu0 0
            %1379 = vmatprep.subr.bf16.mxu0 0
            %1380 = vmatpush1.bf16.msra.mxu0 0
            %1381 = vmatprep.subr.bf16.mxu0 0
            %1382 = vmatpush1.bf16.msra.mxu0 0
            %1383 = vmatprep.subr.bf16.mxu0 0
            %1384 = vmatpush1.bf16.msra.mxu0 0
            %1385 = vmatprep.subr.bf16.mxu0 0
            %1386 = vmatpush1.bf16.msra.mxu0 0
            %1387 = vmatprep.subr.bf16.mxu0 0
            %1388 = vmatpush1.bf16.msra.mxu0 0
            %1389 = vmatprep.subr.bf16.mxu0 0
            %1390 = vmatpush1.bf16.msra.mxu0 %v1371
            %1391 = vmatprep.subr.bf16.mxu0 0
            %1392 = vmatpush1.bf16.msra.mxu0 %v1370
            %1393 = vmatprep.subr.bf16.mxu0 0
            %1394 = vmatpush2.bf16.msra.mxu0 0
            %1395 = vmatprep.subr.bf16.mxu0 0
            %1396 = vmatpush2.bf16.msra.mxu0 0
            %1397 = vmatprep.subr.bf16.mxu0 0
            %1398 = vmatpush2.bf16.msra.mxu0 0
            %1399 = vmatprep.subr.bf16.mxu0 0
            %1400 = vmatpush2.bf16.msra.mxu0 0
            %1401 = vmatprep.subr.bf16.mxu0 0
            %1402 = vmatpush2.bf16.msra.mxu0 0
            %1403 = vmatprep.subr.bf16.mxu0 0
            %1404 = vmatpush2.bf16.msra.mxu0 0
            %1405 = vmatprep.subr.bf16.mxu0 0
            %1406 = vmatpush2.bf16.msra.mxu0 0
            %1407 = vmatprep.subr.bf16.mxu0 0
            %1408 = vmatpush2.bf16.msra.mxu0 0
            %1409 = vmatprep.mubr.bf16.mxu0 0
            %1410 = vmatmul.mubr.bf16.gmra.mxu0 %v1375
            %v1411 = vpop.f32.mrf.mxu0
            %v1412 = vadd.f32 %v1361, %v1411
            %v1413 = vpop.f32.mrf.mxu0
            %v1414 = vpop.f32.mrf.mxu0
            %v1415 = vpop.f32.mrf.mxu0
            %1416 = vdwg.mxu0
            %v1417 = vmax.f32 %v1412, 0.0
            %v1418 = vpack.c.bf16 %v1417, %v1417
            %v1419 = vld [vmem:[%s9] sm:$0xf]
            %v1420 = vld [vmem:[%s9 + $0x4] sm:$0xf]
            %v1421 = vld [vmem:[%s9 + $0x8] sm:$0xf]
            %v1422 = vld [vmem:[%s9 + $0xc] sm:$0xf]
            %v1423 = vld [vmem:[%s9 + $0x10] sm:$0xf]
            %v1424 = vld [vmem:[%s9 + $0x14] sm:$0xf]
            %v1425 = vld [vmem:[%s9 + $0x18] sm:$0xf]
            %v1426 = vld [vmem:[%s9 + $0x1c] sm:$0xf]
            %v1427 = vld [vmem:[%s9 + $0x20] sm:$0xf]
            %v1428 = vld [vmem:[%s9 + $0x24] sm:$0xf]
            %v1429 = vld [vmem:[%s9 + $0x28] sm:$0xf]
            %v1430 = vld [vmem:[%s9 + $0x2c] sm:$0xf]
            %v1431 = vld [vmem:[%s9 + $0x30] sm:$0xf]
            %v1432 = vld [vmem:[%s9 + $0x34] sm:$0xf]
            %v1433 = vld [vmem:[%s9 + $0x38] sm:$0xf]
            %v1434 = vld [vmem:[%s9 + $0x3c] sm:$0xf]
            %v1435 = vld [vmem:[%s13 + $0x6] sm:$0x1]
            %v1436 = vlaneseq
            %v1437 = vshrl.u32 %v1436, 7
            %v1438 = vsub.s32 0, %v1437
            %v1439 = vrot.slane %v1435, %v1438
            %v1456 = vunpack.c.l.b16 %v1419
            %v1457 = vunpack.c.l.b16 %v1420
            %v1458 = vunpack.c.l.b16 %v1421
            %v1459 = vunpack.c.l.b16 %v1422
            %v1460 = vunpack.c.l.b16 %v1423
            %v1461 = vunpack.c.l.b16 %v1424
            %v1462 = vunpack.c.l.b16 %v1425
            %v1463 = vunpack.c.l.b16 %v1426
            %v1464 = vunpack.c.l.b16 %v1427
            %v1465 = vunpack.c.l.b16 %v1428
            %v1466 = vunpack.c.l.b16 %v1429
            %v1467 = vunpack.c.l.b16 %v1430
            %v1468 = vunpack.c.l.b16 %v1431
            %v1469 = vunpack.c.l.b16 %v1432
            %v1470 = vunpack.c.l.b16 %v1433
            %v1471 = vunpack.c.l.b16 %v1434
            %v1472 = vpack.c.b16 %v1457, %v1456
            %v1473 = vpack.c.b16 %v1459, %v1458
            %v1474 = vpack.c.b16 %v1461, %v1460
            %v1475 = vpack.c.b16 %v1463, %v1462
            %v1476 = vpack.c.b16 %v1465, %v1464
            %v1477 = vpack.c.b16 %v1467, %v1466
            %v1478 = vpack.c.b16 %v1469, %v1468
            %v1479 = vpack.c.b16 %v1471, %v1470
            %1488 = vmatprep.subr.bf16.mxu0 0
            %1489 = vmatpush1.bf16.msra.mxu0 %v1479
            %1490 = vmatprep.subr.bf16.mxu0 0
            %1491 = vmatpush1.bf16.msra.mxu0 %v1478
            %1492 = vmatprep.subr.bf16.mxu0 0
            %1493 = vmatpush1.bf16.msra.mxu0 %v1477
            %1494 = vmatprep.subr.bf16.mxu0 0
            %1495 = vmatpush1.bf16.msra.mxu0 %v1476
            %1496 = vmatprep.subr.bf16.mxu0 0
            %1497 = vmatpush1.bf16.msra.mxu0 %v1475
            %1498 = vmatprep.subr.bf16.mxu0 0
            %1499 = vmatpush1.bf16.msra.mxu0 %v1474
            %1500 = vmatprep.subr.bf16.mxu0 0
            %1501 = vmatpush1.bf16.msra.mxu0 %v1473
            %1502 = vmatprep.subr.bf16.mxu0 0
            %1503 = vmatpush1.bf16.msra.mxu0 %v1472
            %1504 = vmatprep.subr.bf16.mxu0 0
            %1505 = vmatpush2.bf16.msra.mxu0 0
            %1506 = vmatprep.subr.bf16.mxu0 0
            %1507 = vmatpush2.bf16.msra.mxu0 0
            %1508 = vmatprep.subr.bf16.mxu0 0
            %1509 = vmatpush2.bf16.msra.mxu0 0
            %1510 = vmatprep.subr.bf16.mxu0 0
            %1511 = vmatpush2.bf16.msra.mxu0 0
            %1512 = vmatprep.subr.bf16.mxu0 0
            %1513 = vmatpush2.bf16.msra.mxu0 0
            %1514 = vmatprep.subr.bf16.mxu0 0
            %1515 = vmatpush2.bf16.msra.mxu0 0
            %1516 = vmatprep.subr.bf16.mxu0 0
            %1517 = vmatpush2.bf16.msra.mxu0 0
            %1518 = vmatprep.subr.bf16.mxu0 0
            %1519 = vmatpush2.bf16.msra.mxu0 0
            %1520 = vmatprep.mubr.bf16.mxu0 0
            %1521 = vmatmul.mubr.bf16.gmra.mxu0 %v1418
            %v1522 = vpop.f32.mrf.mxu0
            %v1523 = vadd.f32 %v1439, %v1522
            %v1524 = vpop.f32.mrf.mxu0
            %v1525 = vpop.f32.mrf.mxu0
            %v1526 = vpop.f32.mrf.mxu0
            %1527 = vdwg.mxu0
            %v1528 = vadd.f32 %v1351, %v1523
            %v1529 = vld [vmem:[%s13 + $0x7] sm:$0x1]
            %v1530 = vld [vmem:[%s13 + $0x8] sm:$0x1]
            %v1531 = vsel %vm786, %v1528, 0.0
            %1532 = vadd.xlane.f32.xlu0 %v1531
            %v1533 = vpop.xlane.xlu0 %1532
            %v1534 = vmul.f32 %v1533, %v1331
            %v1535 = vsub.f32 %v1528, %v1534
            %v1536 = vmul.f32 %v1535, %v1535
            %v1537 = vsel %vm786, %v1536, 0.0
            %1538 = vadd.xlane.f32.xlu0 %v1537
            %v1539 = vpop.xlane.xlu0 %1538
            %v1540 = vmul.f32 %v1539, %v1331
            %v1541 = vadd.f32 %v1540, 1e-05
            %v1542 = vrsqrt.pop %v1541
            %v1543 = vmul.f32 %v1535, %v1542
            %v1544 = vlaneseq
            %v1545 = vshrl.u32 %v1544, 7
            %v1546 = vsub.s32 0, %v1545
            %v1547 = vrot.slane %v1529, %v1546
            %v1548 = vmul.f32 %v1543, %v1547
            %v1549 = vlaneseq
            %v1550 = vshrl.u32 %v1549, 7
            %v1551 = vsub.s32 0, %v1550
            %v1552 = vrot.slane %v1530, %v1551
            %v1553 = vadd.f32 %v1548, %v1552
            %1554 = vst.msk [vmem:[#allocation3] sm:$0xff] %vm786, %v1553
            %1555 = vst.msk [vmem:[#allocation5] sm:$0xff] %vm786, %v1553
          $region88: #{tpu_custom_call.1} parent=79 // pred_fallthru
            _
        $region80: #{tpu_custom_call.1} parent=75 // pred_fallthru
          _
        %p1556 = scmp.eq.s32.totalorder %s35, 1
        // Predicated region
        $region89: #{tpu_custom_call.1} parent=75 // pred_check
          %p1557 = pneg %p1556
        $region90: #{tpu_custom_call.1} parent=75 // pred_check_branch
          %1559 = sbr.rel (%p1557) target = $region92
        $region91: #{tpu_custom_call.1} parent=75 // pred_region
          %v1560 = vld [vmem:[#allocation3] sm:$0xff]
          %v1561 = vpack.c.bf16 %v1560, %v1560
          %v1562 = vld [vmem:[%s13 + $0x9] sm:$0x1]
          %v1563 = vld [vmem:[%s13 + $0xa] sm:$0x1]
          %v1564 = vld [vmem:[%s13 + $0xb] sm:$0x1]
          %vm1565 = vcmask 64512
          %v1567 = vsel %vm1565, %v610, 0
          %v1570 = vsel %vm1565, %v611, 0
          %vm1572 = vcmask 1043456
          %v1574 = vsel %vm1572, %v1561, 0
          %1576 = vmatprep.subr.bf16.mxu0 0
          %1577 = vmatpush1.bf16.msra.mxu0 0
          %1578 = vmatprep.subr.bf16.mxu0 0
          %1579 = vmatpush1.bf16.msra.mxu0 0
          %1580 = vmatprep.subr.bf16.mxu0 0
          %1581 = vmatpush1.bf16.msra.mxu0 0
          %1582 = vmatprep.subr.bf16.mxu0 0
          %1583 = vmatpush1.bf16.msra.mxu0 0
          %1584 = vmatprep.subr.bf16.mxu0 0
          %1585 = vmatpush1.bf16.msra.mxu0 0
          %1586 = vmatprep.subr.bf16.mxu0 0
          %1587 = vmatpush1.bf16.msra.mxu0 0
          %1588 = vmatprep.subr.bf16.mxu0 0
          %1589 = vmatpush1.bf16.msra.mxu0 0
          %1590 = vmatprep.subr.bf16.mxu0 0
          %1591 = vmatpush1.bf16.msra.mxu0 %v1574
          %1592 = vmatprep.subr.bf16.mxu0 0
          %1593 = vmatpush2.bf16.msra.mxu0 0
          %1594 = vmatprep.subr.bf16.mxu0 0
          %1595 = vmatpush2.bf16.msra.mxu0 0
          %1596 = vmatprep.subr.bf16.mxu0 0
          %1597 = vmatpush2.bf16.msra.mxu0 0
          %1598 = vmatprep.subr.bf16.mxu0 0
          %1599 = vmatpush2.bf16.msra.mxu0 0
          %1600 = vmatprep.subr.bf16.mxu0 0
          %1601 = vmatpush2.bf16.msra.mxu0 0
          %1602 = vmatprep.subr.bf16.mxu0 0
          %1603 = vmatpush2.bf16.msra.mxu0 0
          %1604 = vmatprep.subr.bf16.mxu0 0
          %1605 = vmatpush2.bf16.msra.mxu0 0
          %1606 = vmatprep.subr.bf16.mxu0 0
          %1607 = vmatpush2.bf16.msra.mxu0 0
          %1608 = vmatprep.mubr.bf16.mxu0 0
          %1609 = vmatmul.mubr.bf16.gmra.mxu0 %v1567
          %v1610 = vpop.f32.mrf.mxu0
          %v1611 = vadd.f32 0.0, %v1610
          %v1612 = vpop.f32.mrf.mxu0
          %v1613 = vpop.f32.mrf.mxu0
          %v1614 = vadd.f32 0.0, %v1613
          %v1615 = vpop.f32.mrf.mxu0
          %1616 = vmatprep.mubr.bf16.mxu0 0
          %1617 = vmatmul.mubr.bf16.gmra.mxu0 %v1570
          %v1618 = vpop.f32.mrf.mxu0
          %v1619 = vadd.f32 0.0, %v1618
          %v1620 = vpop.f32.mrf.mxu0
          %v1621 = vpop.f32.mrf.mxu0
          %v1622 = vadd.f32 0.0, %v1621
          %v1623 = vpop.f32.mrf.mxu0
          %1624 = vdwg.mxu0
          %v1625 = vpack.c.bf16 %v1614, %v1611
          %v1626 = vpack.c.bf16 %v1622, %v1619
          %v1628 = vsel %vm1565, %v636, 0
          %v1631 = vsel %vm1565, %v637, 0
          %1633 = vmatprep.subr.bf16.mxu0 0
          %1634 = vmatpush1.bf16.msra.mxu0 0
          %1635 = vmatprep.subr.bf16.mxu0 0
          %1636 = vmatpush1.bf16.msra.mxu0 0
          %1637 = vmatprep.subr.bf16.mxu0 0
          %1638 = vmatpush1.bf16.msra.mxu0 0
          %1639 = vmatprep.subr.bf16.mxu0 0
          %1640 = vmatpush1.bf16.msra.mxu0 0
          %1641 = vmatprep.subr.bf16.mxu0 0
          %1642 = vmatpush1.bf16.msra.mxu0 0
          %1643 = vmatprep.subr.bf16.mxu0 0
          %1644 = vmatpush1.bf16.msra.mxu0 0
          %1645 = vmatprep.subr.bf16.mxu0 0
          %1646 = vmatpush1.bf16.msra.mxu0 0
          %1647 = vmatprep.subr.bf16.mxu0 0
          %1648 = vmatpush1.bf16.msra.mxu0 %v1574
          %1649 = vmatprep.subr.bf16.mxu0 0
          %1650 = vmatpush2.bf16.msra.mxu0 0
          %1651 = vmatprep.subr.bf16.mxu0 0
          %1652 = vmatpush2.bf16.msra.mxu0 0
          %1653 = vmatprep.subr.bf16.mxu0 0
          %1654 = vmatpush2.bf16.msra.mxu0 0
          %1655 = vmatprep.subr.bf16.mxu0 0
          %1656 = vmatpush2.bf16.msra.mxu0 0
          %1657 = vmatprep.subr.bf16.mxu0 0
          %1658 = vmatpush2.bf16.msra.mxu0 0
          %1659 = vmatprep.subr.bf16.mxu0 0
          %1660 = vmatpush2.bf16.msra.mxu0 0
          %1661 = vmatprep.subr.bf16.mxu0 0
          %1662 = vmatpush2.bf16.msra.mxu0 0
          %1663 = vmatprep.subr.bf16.mxu0 0
          %1664 = vmatpush2.bf16.msra.mxu0 0
          %1665 = vmatprep.mubr.bf16.mxu0 0
          %1666 = vmatmul.mubr.bf16.gmra.mxu0 %v1628
          %v1667 = vpop.f32.mrf.mxu0
          %v1668 = vadd.f32 0.0, %v1667
          %v1669 = vpop.f32.mrf.mxu0
          %v1670 = vpop.f32.mrf.mxu0
          %v1671 = vadd.f32 0.0, %v1670
          %v1672 = vpop.f32.mrf.mxu0
          %1673 = vmatprep.mubr.bf16.mxu0 0
          %1674 = vmatmul.mubr.bf16.gmra.mxu0 %v1631
          %v1675 = vpop.f32.mrf.mxu0
          %v1676 = vadd.f32 0.0, %v1675
          %v1677 = vpop.f32.mrf.mxu0
          %v1678 = vpop.f32.mrf.mxu0
          %v1679 = vadd.f32 0.0, %v1678
          %v1680 = vpop.f32.mrf.mxu0
          %1681 = vdwg.mxu0
          %v1682 = vpack.c.bf16 %v1671, %v1668
          %v1683 = vpack.c.bf16 %v1679, %v1676
          %1686 = vrot.lane.b32.xlu0 %v582, 32
          %v1687 = vpop.permute.xlu0 %1686
          %1688 = vrot.lane.b32.xlu0 %v583, 32
          %v1689 = vpop.permute.xlu0 %1688
          %1692 = vrot.lane.b32.xlu0 %v1682, 64
          %v1693 = vpop.permute.xlu0 %1692
          %1694 = vrot.lane.b32.xlu0 %v1683, 64
          %v1695 = vpop.permute.xlu0 %1694
          %vm1696 = vcmask 261120
          %v1699 = vsel %vm1696, %v1625, %v1687
          %v1702 = vsel %vm1696, %v1626, %v1689
          %vm1703 = vcmask 523264
          %v1705 = vsel %vm1703, %v1699, %v1693
          %v1707 = vsel %vm1703, %v1702, %v1695
          %v1708 = vld [vmem:[%s10] sm:$0xf]
          %v1709 = vld [vmem:[%s10 + $0x4] sm:$0xf]
          %v1710 = vld [vmem:[%s10 + $0x8] sm:$0xf]
          %v1711 = vld [vmem:[%s10 + $0xc] sm:$0xf]
          %v1712 = vld [vmem:[%s10 + $0x10] sm:$0xf]
          %v1713 = vld [vmem:[%s10 + $0x14] sm:$0xf]
          %v1714 = vld [vmem:[%s10 + $0x18] sm:$0xf]
          %v1715 = vld [vmem:[%s10 + $0x1c] sm:$0xf]
          %v1716 = vld [vmem:[%s10 + $0x20] sm:$0xf]
          %v1717 = vld [vmem:[%s10 + $0x24] sm:$0xf]
          %v1718 = vld [vmem:[%s10 + $0x28] sm:$0xf]
          %v1719 = vld [vmem:[%s10 + $0x2c] sm:$0xf]
          %v1720 = vlaneseq
          %v1721 = vshrl.u32 %v1720, 7
          %v1722 = vsub.s32 0, %v1721
          %v1723 = vrot.slane %v1562, %v1722
          %v1736 = vunpack.c.l.b16 %v1708
          %v1737 = vunpack.c.l.b16 %v1709
          %v1738 = vunpack.c.l.b16 %v1710
          %v1739 = vunpack.c.l.b16 %v1711
          %v1740 = vunpack.c.l.b16 %v1712
          %v1741 = vunpack.c.l.b16 %v1713
          %v1742 = vunpack.c.l.b16 %v1714
          %v1743 = vunpack.c.l.b16 %v1715
          %v1744 = vunpack.c.l.b16 %v1716
          %v1745 = vunpack.c.l.b16 %v1717
          %v1746 = vunpack.c.l.b16 %v1718
          %v1747 = vunpack.c.l.b16 %v1719
          %v1748 = vpack.c.b16 %v1737, %v1736
          %v1749 = vpack.c.b16 %v1739, %v1738
          %v1750 = vpack.c.b16 %v1741, %v1740
          %v1751 = vpack.c.b16 %v1743, %v1742
          %v1752 = vpack.c.b16 %v1745, %v1744
          %v1753 = vpack.c.b16 %v1747, %v1746
          %vm1760 = vcmask 785408
          %v1761 = vsel %vm1760, %v1705, 0
          %v1763 = vsel %vm1760, %v1707, 0
          %1765 = vmatprep.subr.bf16.mxu0 0
          %1766 = vmatpush1.bf16.msra.mxu0 0
          %1767 = vmatprep.subr.bf16.mxu0 0
          %1768 = vmatpush1.bf16.msra.mxu0 0
          %1769 = vmatprep.subr.bf16.mxu0 0
          %1770 = vmatpush1.bf16.msra.mxu0 %v1753
          %1771 = vmatprep.subr.bf16.mxu0 0
          %1772 = vmatpush1.bf16.msra.mxu0 %v1752
          %1773 = vmatprep.subr.bf16.mxu0 0
          %1774 = vmatpush1.bf16.msra.mxu0 %v1751
          %1775 = vmatprep.subr.bf16.mxu0 0
          %1776 = vmatpush1.bf16.msra.mxu0 %v1750
          %1777 = vmatprep.subr.bf16.mxu0 0
          %1778 = vmatpush1.bf16.msra.mxu0 %v1749
          %1779 = vmatprep.subr.bf16.mxu0 0
          %1780 = vmatpush1.bf16.msra.mxu0 %v1748
          %1781 = vmatprep.subr.bf16.mxu0 0
          %1782 = vmatpush2.bf16.msra.mxu0 0
          %1783 = vmatprep.subr.bf16.mxu0 0
          %1784 = vmatpush2.bf16.msra.mxu0 0
          %1785 = vmatprep.subr.bf16.mxu0 0
          %1786 = vmatpush2.bf16.msra.mxu0 0
          %1787 = vmatprep.subr.bf16.mxu0 0
          %1788 = vmatpush2.bf16.msra.mxu0 0
          %1789 = vmatprep.subr.bf16.mxu0 0
          %1790 = vmatpush2.bf16.msra.mxu0 0
          %1791 = vmatprep.subr.bf16.mxu0 0
          %1792 = vmatpush2.bf16.msra.mxu0 0
          %1793 = vmatprep.subr.bf16.mxu0 0
          %1794 = vmatpush2.bf16.msra.mxu0 0
          %1795 = vmatprep.subr.bf16.mxu0 0
          %1796 = vmatpush2.bf16.msra.mxu0 0
          %1797 = vmatprep.mubr.bf16.mxu0 0
          %1798 = vmatmul.mubr.bf16.gmra.mxu0 %v1761
          %v1799 = vpop.f32.mrf.mxu0
          %v1800 = vadd.f32 %v1723, %v1799
          %v1801 = vpop.f32.mrf.mxu0
          %v1802 = vpop.f32.mrf.mxu0
          %v1803 = vadd.f32 %v1723, %v1802
          %v1804 = vpop.f32.mrf.mxu0
          %1805 = vmatprep.mubr.bf16.mxu0 0
          %1806 = vmatmul.mubr.bf16.gmra.mxu0 %v1763
          %v1807 = vpop.f32.mrf.mxu0
          %v1808 = vadd.f32 %v1723, %v1807
          %v1809 = vpop.f32.mrf.mxu0
          %v1810 = vpop.f32.mrf.mxu0
          %v1811 = vadd.f32 %v1723, %v1810
          %v1812 = vpop.f32.mrf.mxu0
          %1813 = vdwg.mxu0
          %v1814 = vmul.f32 %v1800, %v1800
          %v1815 = vmul.f32 %v1803, %v1803
          %v1816 = vmul.f32 %v1808, %v1808
          %v1817 = vmul.f32 %v1811, %v1811
          %v1818 = vmul.f32 %v1800, %v1814
          %v1819 = vmul.f32 %v1803, %v1815
          %v1820 = vmul.f32 %v1808, %v1816
          %v1821 = vmul.f32 %v1811, %v1817
          %v1822 = vmul.f32 %v1818, 0.044715
          %v1823 = vmul.f32 %v1819, 0.044715
          %v1824 = vmul.f32 %v1820, 0.044715
          %v1825 = vmul.f32 %v1821, 0.044715
          %v1826 = vadd.f32 %v1800, %v1822
          %v1827 = vadd.f32 %v1803, %v1823
          %v1828 = vadd.f32 %v1808, %v1824
          %v1829 = vadd.f32 %v1811, %v1825
          %v1830 = vmul.f32 %v1826, 0.7978846
          %v1831 = vmul.f32 %v1827, 0.7978846
          %v1832 = vmul.f32 %v1828, 0.7978846
          %v1833 = vmul.f32 %v1829, 0.7978846
          %v1834 = vtanh.pop %v1830
          %v1835 = vtanh.pop %v1831
          %v1836 = vtanh.pop %v1832
          %v1837 = vtanh.pop %v1833
          %v1838 = vadd.f32 %v1834, 1.0
          %v1839 = vadd.f32 %v1835, 1.0
          %v1840 = vadd.f32 %v1836, 1.0
          %v1841 = vadd.f32 %v1837, 1.0
          %v1842 = vmul.f32 %v1838, 0.5
          %v1843 = vmul.f32 %v1839, 0.5
          %v1844 = vmul.f32 %v1840, 0.5
          %v1845 = vmul.f32 %v1841, 0.5
          %v1846 = vmul.f32 %v1800, %v1842
          %v1847 = vmul.f32 %v1803, %v1843
          %v1848 = vmul.f32 %v1808, %v1844
          %v1849 = vmul.f32 %v1811, %v1845
          %v1850 = vpack.c.bf16 %v1847, %v1846
          %v1851 = vpack.c.bf16 %v1849, %v1848
          %v1852 = vld [vmem:[%s11] sm:$0xf]
          %v1853 = vld [vmem:[%s11 + $0x4] sm:$0xf]
          %v1854 = vld [vmem:[%s11 + $0x8] sm:$0xf]
          %v1855 = vld [vmem:[%s11 + $0xc] sm:$0xf]
          %v1856 = vlaneseq
          %v1857 = vshrl.u32 %v1856, 7
          %v1858 = vsub.s32 0, %v1857
          %v1859 = vrot.slane %v1563, %v1858
          %v1864 = vunpack.c.l.b16 %v1852
          %v1865 = vunpack.c.l.b16 %v1853
          %v1866 = vunpack.c.l.b16 %v1854
          %v1867 = vunpack.c.l.b16 %v1855
          %v1868 = vpack.c.b16 %v1865, %v1864
          %v1869 = vpack.c.b16 %v1867, %v1866
          %v1873 = vsel %vm1696, %v1850, 0
          %v1876 = vsel %vm1696, %v1851, 0
          %1878 = vmatprep.subr.bf16.mxu0 0
          %1879 = vmatpush1.bf16.msra.mxu0 0
          %1880 = vmatprep.subr.bf16.mxu0 0
          %1881 = vmatpush1.bf16.msra.mxu0 0
          %1882 = vmatprep.subr.bf16.mxu0 0
          %1883 = vmatpush1.bf16.msra.mxu0 0
          %1884 = vmatprep.subr.bf16.mxu0 0
          %1885 = vmatpush1.bf16.msra.mxu0 0
          %1886 = vmatprep.subr.bf16.mxu0 0
          %1887 = vmatpush1.bf16.msra.mxu0 0
          %1888 = vmatprep.subr.bf16.mxu0 0
          %1889 = vmatpush1.bf16.msra.mxu0 0
          %1890 = vmatprep.subr.bf16.mxu0 0
          %1891 = vmatpush1.bf16.msra.mxu0 %v1869
          %1892 = vmatprep.subr.bf16.mxu0 0
          %1893 = vmatpush1.bf16.msra.mxu0 %v1868
          %1894 = vmatprep.subr.bf16.mxu0 0
          %1895 = vmatpush2.bf16.msra.mxu0 0
          %1896 = vmatprep.subr.bf16.mxu0 0
          %1897 = vmatpush2.bf16.msra.mxu0 0
          %1898 = vmatprep.subr.bf16.mxu0 0
          %1899 = vmatpush2.bf16.msra.mxu0 0
          %1900 = vmatprep.subr.bf16.mxu0 0
          %1901 = vmatpush2.bf16.msra.mxu0 0
          %1902 = vmatprep.subr.bf16.mxu0 0
          %1903 = vmatpush2.bf16.msra.mxu0 0
          %1904 = vmatprep.subr.bf16.mxu0 0
          %1905 = vmatpush2.bf16.msra.mxu0 0
          %1906 = vmatprep.subr.bf16.mxu0 0
          %1907 = vmatpush2.bf16.msra.mxu0 0
          %1908 = vmatprep.subr.bf16.mxu0 0
          %1909 = vmatpush2.bf16.msra.mxu0 0
          %1910 = vmatprep.mubr.bf16.mxu0 0
          %1911 = vmatmul.mubr.bf16.gmra.mxu0 %v1873
          %v1912 = vpop.f32.mrf.mxu0
          %v1913 = vadd.f32 %v1859, %v1912
          %v1914 = vpop.f32.mrf.mxu0
          %v1915 = vpop.f32.mrf.mxu0
          %v1916 = vadd.f32 %v1859, %v1915
          %v1917 = vpop.f32.mrf.mxu0
          %1918 = vmatprep.mubr.bf16.mxu0 0
          %1919 = vmatmul.mubr.bf16.gmra.mxu0 %v1876
          %v1920 = vpop.f32.mrf.mxu0
          %v1921 = vadd.f32 %v1859, %v1920
          %v1922 = vpop.f32.mrf.mxu0
          %v1923 = vpop.f32.mrf.mxu0
          %v1924 = vadd.f32 %v1859, %v1923
          %v1925 = vpop.f32.mrf.mxu0
          %1926 = vdwg.mxu0
          %v1927 = vmul.f32 %v1913, %v1913
          %v1928 = vmul.f32 %v1916, %v1916
          %v1929 = vmul.f32 %v1921, %v1921
          %v1930 = vmul.f32 %v1924, %v1924
          %v1931 = vmul.f32 %v1913, %v1927
          %v1932 = vmul.f32 %v1916, %v1928
          %v1933 = vmul.f32 %v1921, %v1929
          %v1934 = vmul.f32 %v1924, %v1930
          %v1935 = vmul.f32 %v1931, 0.044715
          %v1936 = vmul.f32 %v1932, 0.044715
          %v1937 = vmul.f32 %v1933, 0.044715
          %v1938 = vmul.f32 %v1934, 0.044715
          %v1939 = vadd.f32 %v1913, %v1935
          %v1940 = vadd.f32 %v1916, %v1936
          %v1941 = vadd.f32 %v1921, %v1937
          %v1942 = vadd.f32 %v1924, %v1938
          %v1943 = vmul.f32 %v1939, 0.7978846
          %v1944 = vmul.f32 %v1940, 0.7978846
          %v1945 = vmul.f32 %v1941, 0.7978846
          %v1946 = vmul.f32 %v1942, 0.7978846
          %v1947 = vtanh.pop %v1943
          %v1948 = vtanh.pop %v1944
          %v1949 = vtanh.pop %v1945
          %v1950 = vtanh.pop %v1946
          %v1951 = vadd.f32 %v1947, 1.0
          %v1952 = vadd.f32 %v1948, 1.0
          %v1953 = vadd.f32 %v1949, 1.0
          %v1954 = vadd.f32 %v1950, 1.0
          %v1955 = vmul.f32 %v1951, 0.5
          %v1956 = vmul.f32 %v1952, 0.5
          %v1957 = vmul.f32 %v1953, 0.5
          %v1958 = vmul.f32 %v1954, 0.5
          %v1959 = vmul.f32 %v1913, %v1955
          %v1960 = vmul.f32 %v1916, %v1956
          %v1961 = vmul.f32 %v1921, %v1957
          %v1962 = vmul.f32 %v1924, %v1958
          %v1963 = vpack.c.bf16 %v1960, %v1959
          %v1964 = vpack.c.bf16 %v1962, %v1961
          %v1965 = vld [vmem:[%s12] sm:$0xf]
          %v1966 = vld [vmem:[%s12 + $0x4] sm:$0xf]
          %v1967 = vld [vmem:[%s12 + $0x8] sm:$0xf]
          %v1968 = vld [vmem:[%s12 + $0xc] sm:$0xf]
          %v1969 = vlaneseq
          %v1970 = vshrl.u32 %v1969, 7
          %v1971 = vsub.s32 0, %v1970
          %v1972 = vrot.slane %v1564, %v1971
          %v1977 = vunpack.c.l.b16 %v1965
          %v1978 = vunpack.c.l.b16 %v1966
          %v1979 = vunpack.c.l.b16 %v1967
          %v1980 = vunpack.c.l.b16 %v1968
          %v1981 = vpack.c.b16 %v1978, %v1977
          %v1982 = vpack.c.b16 %v1980, %v1979
          %v1986 = vsel %vm1696, %v1963, 0
          %v1989 = vsel %vm1696, %v1964, 0
          %1991 = vmatprep.subr.bf16.mxu0 0
          %1992 = vmatpush1.bf16.msra.mxu0 0
          %1993 = vmatprep.subr.bf16.mxu0 0
          %1994 = vmatpush1.bf16.msra.mxu0 0
          %1995 = vmatprep.subr.bf16.mxu0 0
          %1996 = vmatpush1.bf16.msra.mxu0 0
          %1997 = vmatprep.subr.bf16.mxu0 0
          %1998 = vmatpush1.bf16.msra.mxu0 0
          %1999 = vmatprep.subr.bf16.mxu0 0
          %2000 = vmatpush1.bf16.msra.mxu0 0
          %2001 = vmatprep.subr.bf16.mxu0 0
          %2002 = vmatpush1.bf16.msra.mxu0 0
          %2003 = vmatprep.subr.bf16.mxu0 0
          %2004 = vmatpush1.bf16.msra.mxu0 %v1982
          %2005 = vmatprep.subr.bf16.mxu0 0
          %2006 = vmatpush1.bf16.msra.mxu0 %v1981
          %2007 = vmatprep.subr.bf16.mxu0 0
          %2008 = vmatpush2.bf16.msra.mxu0 0
          %2009 = vmatprep.subr.bf16.mxu0 0
          %2010 = vmatpush2.bf16.msra.mxu0 0
          %2011 = vmatprep.subr.bf16.mxu0 0
          %2012 = vmatpush2.bf16.msra.mxu0 0
          %2013 = vmatprep.subr.bf16.mxu0 0
          %2014 = vmatpush2.bf16.msra.mxu0 0
          %2015 = vmatprep.subr.bf16.mxu0 0
          %2016 = vmatpush2.bf16.msra.mxu0 0
          %2017 = vmatprep.subr.bf16.mxu0 0
          %2018 = vmatpush2.bf16.msra.mxu0 0
          %2019 = vmatprep.subr.bf16.mxu0 0
          %2020 = vmatpush2.bf16.msra.mxu0 0
          %2021 = vmatprep.subr.bf16.mxu0 0
          %2022 = vmatpush2.bf16.msra.mxu0 0
          %2023 = vmatprep.mubr.bf16.mxu0 0
          %2024 = vmatmul.mubr.bf16.gmra.mxu0 %v1986
          %v2025 = vpop.f32.mrf.mxu0
          %v2026 = vadd.f32 %v1972, %v2025
          %v2027 = vpop.f32.mrf.mxu0
          %v2028 = vpop.f32.mrf.mxu0
          %v2029 = vadd.f32 %v1972, %v2028
          %v2030 = vpop.f32.mrf.mxu0
          %2031 = vmatprep.mubr.bf16.mxu0 0
          %2032 = vmatmul.mubr.bf16.gmra.mxu0 %v1989
          %v2033 = vpop.f32.mrf.mxu0
          %v2034 = vadd.f32 %v1972, %v2033
          %v2035 = vpop.f32.mrf.mxu0
          %v2036 = vpop.f32.mrf.mxu0
          %v2037 = vadd.f32 %v1972, %v2036
          %v2038 = vpop.f32.mrf.mxu0
          %2039 = vdwg.mxu0
          %v2040 = vadd.f32 %v578, %v2026
          %v2041 = vadd.f32 %v579, %v2029
          %v2042 = vadd.f32 %v580, %v2034
          %v2043 = vadd.f32 %v581, %v2037
          %v2044 = vld [vmem:[%s13 + $0xc] sm:$0x1]
          %v2045 = vld [vmem:[%s13 + $0xd] sm:$0x1]
          %v2046 = vsel %vm1696, %v2040, 0.0
          %2047 = vadd.xlane.f32.xlu0 %v2046
          %v2048 = vpop.xlane.xlu0 %2047
          %v2049 = vsel %vm1696, %v2041, 0.0
          %2050 = vadd.xlane.f32.xlu0 %v2049
          %v2051 = vpop.xlane.xlu0 %2050
          %v2052 = vsel %vm1696, %v2042, 0.0
          %2053 = vadd.xlane.f32.xlu0 %v2052
          %v2054 = vpop.xlane.xlu0 %2053
          %v2055 = vsel %vm1696, %v2043, 0.0
          %2056 = vadd.xlane.f32.xlu0 %v2055
          %v2057 = vpop.xlane.xlu0 %2056
          %v2058 = vrcp.pop 32.0
          %v2059 = vmul.f32 %v2048, %v2058
          %v2060 = vmul.f32 %v2051, %v2058
          %v2061 = vmul.f32 %v2054, %v2058
          %v2062 = vmul.f32 %v2057, %v2058
          %v2063 = vsub.f32 %v2040, %v2059
          %v2064 = vsub.f32 %v2041, %v2060
          %v2065 = vsub.f32 %v2042, %v2061
          %v2066 = vsub.f32 %v2043, %v2062
          %v2067 = vmul.f32 %v2063, %v2063
          %v2068 = vmul.f32 %v2064, %v2064
          %v2069 = vmul.f32 %v2065, %v2065
          %v2070 = vmul.f32 %v2066, %v2066
          %v2071 = vsel %vm1696, %v2067, 0.0
          %2072 = vadd.xlane.f32.xlu0 %v2071
          %v2073 = vpop.xlane.xlu0 %2072
          %v2074 = vsel %vm1696, %v2068, 0.0
          %2075 = vadd.xlane.f32.xlu0 %v2074
          %v2076 = vpop.xlane.xlu0 %2075
          %v2077 = vsel %vm1696, %v2069, 0.0
          %2078 = vadd.xlane.f32.xlu0 %v2077
          %v2079 = vpop.xlane.xlu0 %2078
          %v2080 = vsel %vm1696, %v2070, 0.0
          %2081 = vadd.xlane.f32.xlu0 %v2080
          %v2082 = vpop.xlane.xlu0 %2081
          %v2083 = vmul.f32 %v2073, %v2058
          %v2084 = vmul.f32 %v2076, %v2058
          %v2085 = vmul.f32 %v2079, %v2058
          %v2086 = vmul.f32 %v2082, %v2058
          %v2087 = vadd.f32 %v2083, 1e-05
          %v2088 = vadd.f32 %v2084, 1e-05
          %v2089 = vadd.f32 %v2085, 1e-05
          %v2090 = vadd.f32 %v2086, 1e-05
          %v2091 = vrsqrt.pop %v2087
          %v2092 = vrsqrt.pop %v2088
          %v2093 = vrsqrt.pop %v2089
          %v2094 = vrsqrt.pop %v2090
          %v2095 = vmul.f32 %v2063, %v2091
          %v2096 = vmul.f32 %v2064, %v2092
          %v2097 = vmul.f32 %v2065, %v2093
          %v2098 = vmul.f32 %v2066, %v2094
          %v2099 = vlaneseq
          %v2100 = vshrl.u32 %v2099, 7
          %v2101 = vsub.s32 0, %v2100
          %v2102 = vrot.slane %v2044, %v2101
          %v2103 = vmul.f32 %v2095, %v2102
          %v2104 = vmul.f32 %v2096, %v2102
          %v2105 = vmul.f32 %v2097, %v2102
          %v2106 = vmul.f32 %v2098, %v2102
          %v2107 = vlaneseq
          %v2108 = vshrl.u32 %v2107, 7
          %v2109 = vsub.s32 0, %v2108
          %v2110 = vrot.slane %v2045, %v2109
          %v2111 = vadd.f32 %v2103, %v2110
          %v2112 = vadd.f32 %v2104, %v2110
          %v2113 = vadd.f32 %v2105, %v2110
          %v2114 = vadd.f32 %v2106, %v2110
          %2115 = vst.msk [vmem:[%s544] sm:$0xff] %vm1696, %v2111
          %2116 = vst.msk [vmem:[%s544 + $0x8] sm:$0xff] %vm1696, %v2112
          %2117 = vst.msk [vmem:[%s544 + $0x10] sm:$0xff] %vm1696, %v2113
          %2118 = vst.msk [vmem:[%s544 + $0x18] sm:$0xff] %vm1696, %v2114
        $region92: #{tpu_custom_call.1} parent=75 // pred_fallthru
          _
        %s2119 = sand.u32 %s388, 1
        %s2120 = scalar_lea.sflag [#allocation8], %s2119
        %s2121 = sand.u32 %s388, 1
        %s2122 = smul.addr %s2121, 32
        %s2123 = scalar_lea.vmem [#allocation7], %s2122
        // Predicated region
        $region93: #{tpu_custom_call.1} parent=75 // pred_check
          %p2124 = pneg %p370
        $region94: #{tpu_custom_call.1} parent=75 // pred_check_branch
          %2126 = sbr.rel (%p2124) target = $region96
        $region95: #{tpu_custom_call.1} parent=75 // pred_region
          %s2128 = ssub.s32 128, 128
          %2129 = vsyncadd [#allocation6], %s2128
          %s2131 = sshll.u32 [#allocation5], 4
          %s2132 = int_to_ptr.vmem [resolvable:$true] %s2131
          %2134 = dma.vmem_to_hbm [thread:$0]  %s2132, 128, %s14, [#allocation6]
        $region96: #{tpu_custom_call.1} parent=75 // pred_fallthru
          _
        // Predicated region
        $region97: #{tpu_custom_call.1} parent=75 // pred_check
          %p2135 = pneg %p398
        $region98: #{tpu_custom_call.1} parent=75 // pred_check_branch
          %2137 = sbr.rel (%p2135) target = $region100
        $region99: #{tpu_custom_call.1} parent=75 // pred_region
          %s2138 = smul.u32 %s35, %s36
          %s2139 = smul.u32 4, %s2138
          %s2141 = ssub.s32 512, 512
          %2142 = vsyncadd %s2120, %s2141
          %s2143 = smul.addr %s2139, 128
          %s2144 = scalar_lea.hbm %s15, %s2143
          %s2145 = sshll.u32 %s2123, 4
          %s2146 = int_to_ptr.vmem [resolvable:$true] %s2145
          %2151 = dma.vmem_to_hbm [thread:$0]  %s2146, 512, %s2144, %s2120, 128, 128, 8
        $region100: #{tpu_custom_call.1} parent=75 // pred_fallthru
          _
        // Predicated region
        $region101: #{tpu_custom_call.1} parent=75 // pred_check
          %p2152 = pneg %p370
        $region102: #{tpu_custom_call.1} parent=75 // pred_check_branch
          %2154 = sbr.rel (%p2152) target = $region104
        $region103: #{tpu_custom_call.1} parent=75 // pred_region
          %2155 = dma.done [#allocation6], 128
        $region104: #{tpu_custom_call.1} parent=75 // pred_fallthru
          _
      $region76: #{tpu_custom_call.1} parent=5 // pred_fallthru
        _
      %p2156 = scmp.le.s32.totalorder 2, %s26
      // Predicated region
      $region105: #{tpu_custom_call.1} parent=5 // pred_check
        %p2157 = pneg %p2156
      $region106: #{tpu_custom_call.1} parent=5 // pred_check_branch
        %2159 = sbr.rel (%p2157) target = $region108
      $region107: #{tpu_custom_call.1} parent=5 // pred_region
        %s2160 = ssub.s32 %s26, 2
        // Predicated region
        $region109: #{tpu_custom_call.1} parent=107 // pred_check
          %p2161 = pneg %p404
        $region110: #{tpu_custom_call.1} parent=107 // pred_check_branch
          %2163 = sbr.rel (%p2161) target = $region112
        $region111: #{tpu_custom_call.1} parent=107 // pred_region
          %s2164 = sand.u32 %s389, 1
          %s2165 = scalar_lea.sflag [#allocation8], %s2164
          %s2166 = sand.u32 %s389, 1
          %s2167 = smul.addr %s2166, 32
          %s2168 = scalar_lea.vmem [#allocation7], %s2167
          %2169 = dma.done %s2165, 512
        $region112: #{tpu_custom_call.1} parent=107 // pred_fallthru
          _
      $region108: #{tpu_custom_call.1} parent=5 // pred_fallthru
        _
    $region6: #{tpu_custom_call.1} parent=1 // loop_footer
      %s30 = sadd.s32 1, %s26
    $region7: #{tpu_custom_call.1} parent=1 // loop_footer_branch
      %25 = sbr.rel target = $region3
    $region8: #{tpu_custom_call.1} parent=1 // loop_exit
      _
    %2170 = vsyncpa [#allocation6], 1
    %s2171 = scalar_lea.sflag [#allocation6], 1
    %2172 = vsyncpa %s2171, 1
    %2173 = vsyncpa [#allocation8], 1
    %s2174 = scalar_lea.sflag [#allocation8], 1
    %2175 = vsyncpa %s2174, 1

</llo_original>
